<compile_context>
chip_gen: v7x
topology: tpu7x:2x2x1
jax: 0.10.0
libtpu: 0.0.40
codegen_flags: <defaults>
</compile_context>

<pallas_src>
import functools

import jax
import jax.numpy as jnp
from jax.experimental import pallas as pl
from jax.experimental.pallas import tpu as pltpu


_INV_SQRT2 = 0.7071067811865476


def _layernorm_f32(v, g, b, eps):
    """LayerNorm over the last axis in float32. g, b are (1, C)."""
    mu = jnp.mean(v, axis=-1, keepdims=True)
    var = jnp.mean(jnp.square(v - mu), axis=-1, keepdims=True)
    return (v - mu) * jax.lax.rsqrt(var + eps) * g + b


def _vmem_limit_bytes():
    """Generation-aware scoped-VMEM limit: 64 MiB on v5e/v6e, ~48 MiB on v7x."""
    try:
        cap = int(pltpu.get_tpu_info().vmem_capacity_bytes)
        return min(64 * 1024 * 1024, (cap * 3) // 4)
    except Exception:
        return 48 * 1024 * 1024   # safe on every generation (>= default scoped VMEM)


def _heads_per_step(num_heads, head_dim, max_width=256):
    """Largest divisor of num_heads with hps*head_dim <= max_width (MXU width)."""
    hps = 1
    for cand in range(num_heads, 0, -1):
        if num_heads % cand == 0 and cand * head_dim <= max_width:
            hps = cand
            break
    return hps


# --------------------------- stage 1: attention ---------------------------
def _attn_kernel(x_ref, g1_ref, b1_ref, wq_ref, wk_ref, wv_ref, wproj_ref,
                 bproj_ref, x1_ref, xn_scr, o_scr, acc_scr,
                 *, hps, head_dim, eps, compute_dtype):
    """Grid = (B, num_head_groups): accumulate per-group projected outputs."""
    g = pl.program_id(1)
    hd = head_dim
    f32 = jnp.float32

    @pl.when(g == 0)
    def _init():
        xn = _layernorm_f32(x_ref[...], g1_ref[...], b1_ref[...], eps)
        xn_scr[...] = xn.astype(compute_dtype)          # reused by every group
        acc_scr[...] = jnp.zeros_like(acc_scr)           # f32 head accumulator

    xn = xn_scr[...]                                     # (N, C) bf16

    # One lane-dense dot each for Q, K, V of this head group: (N, C)@(C, hps*hd).
    # The (C, hps*hd) slab is selected with a free leading-dim ref index.
    q = jnp.dot(xn, wq_ref[g], preferred_element_type=f32).astype(compute_dtype)
    k = jnp.dot(xn, wk_ref[g], preferred_element_type=f32).astype(compute_dtype)
    v = jnp.dot(xn, wv_ref[g], preferred_element_type=f32).astype(compute_dtype)

    # Per-head softmax attention (hps is small and static); only one (N, N)
    # score matrix is ever live.  1/sqrt(hd) was pre-folded into Wq.
    for h in range(hps):
        sl = slice(h * hd, (h + 1) * hd)
        s = jax.lax.dot_general(q[:, sl], k[:, sl], (((1,), (1,)), ((), ())),
                                preferred_element_type=f32)          # (N, N)
        s = s - jnp.max(s, axis=-1, keepdims=True)
        p = jnp.exp(s)
        p = p * pl.reciprocal(jnp.sum(p, axis=-1, keepdims=True), approx=True)
        oh = jnp.dot(p.astype(compute_dtype), v[:, sl],
                     preferred_element_type=f32)                     # (N, hd)
        o_scr[:, sl] = oh                                            # pack group

    # One deep projection dot per group: (N, hps*hd) @ (hps*hd, C).
    # Summing the per-group results == concat_h(o_h) @ Wproj.
    acc_scr[...] += jnp.dot(o_scr[...].astype(compute_dtype), wproj_ref[g],
                            preferred_element_type=f32)

    @pl.when(g == pl.num_programs(1) - 1)
    def _finalize():
        x1_ref[...] = (x_ref[...] + bproj_ref[...] + acc_scr[...]).astype(x1_ref.dtype)


# ------------------------------ stage 2: MLP ------------------------------
def _mlp_kernel(x1_ref, g2_ref, b2_ref, wfc1_ref, bfc1_ref, wfc2_ref, bfc2_ref,
                o_ref, *, eps, compute_dtype):
    f32 = jnp.float32
    x1 = x1_ref[...]                                           # (TN, C) f32
    x1n = _layernorm_f32(x1, g2_ref[...], b2_ref[...], eps)

    h = jnp.dot(x1n.astype(compute_dtype), wfc1_ref[...],
                preferred_element_type=f32) + bfc1_ref[...]    # (TN, Hm) f32
    h = h * (0.5 * (1.0 + jax.lax.erf(h * _INV_SQRT2)))        # exact-erf GELU
    h2 = jnp.dot(h.astype(compute_dtype), wfc2_ref[...],
                 preferred_element_type=f32) + bfc2_ref[...]   # (TN, C) f32
    o_ref[...] = (x1 + h2).astype(o_ref.dtype)


# ------------------------------- wrapper ----------------------------------
def transformer_block(x, params, *, num_heads, eps=1e-5,
                      compute_dtype=jnp.bfloat16):
    B, N, C = x.shape
    assert C % num_heads == 0
    hd = C // num_heads
    Hm = params["w_fc1"].shape[1]
    scale = float(hd) ** -0.5

    hps = _heads_per_step(num_heads, hd)     # heads per grid step
    G = num_heads // hps                     # head groups
    Gw = hps * hd                            # group width

    # ---- one-time wrapper-side weight prep (outside the kernels) ----
    # The 3C qkv columns are laid out [Q | K | V], each (num_heads, hd).
    # Fold 1/sqrt(hd) into Q, regroup each of Q/K/V as (G, C, hps*hd) slabs,
    # and cast to bf16 once.
    def _group_cols(w):                      # (C, C) -> (G, C, Gw)
        return jnp.transpose(w.reshape(C, G, Gw), (1, 0, 2)).astype(compute_dtype)

    wq = _group_cols(params["w_qkv"][:, :C] * scale)
    wk = _group_cols(params["w_qkv"][:, C:2 * C])
    wv = _group_cols(params["w_qkv"][:, 2 * C:])
    # (C, C) -> (G, Gw, C): rows grouped per head group, so
    # sum_g o_g @ Wproj[g] == concat_h(o_h) @ Wproj.
    w_proj = params["w_proj"].reshape(G, Gw, C).astype(compute_dtype)
    w_fc1 = params["w_fc1"].astype(compute_dtype)
    w_fc2 = params["w_fc2"].astype(compute_dtype)

    vmem_limit = _vmem_limit_bytes()

    # ---------------- stage 1: x1 = x + attn(LN1(x)) ----------------
    attn_kernel = functools.partial(_attn_kernel, hps=hps, head_dim=hd, eps=eps,
                                    compute_dtype=compute_dtype)
    x1 = pl.pallas_call(
        attn_kernel,
        out_shape=jax.ShapeDtypeStruct((B, N, C), x.dtype),
        grid_spec=pltpu.PrefetchScalarGridSpec(
            num_scalar_prefetch=0,
            grid=(B, G),
            in_specs=[
                pl.BlockSpec((None, N, C), lambda b, g: (b, 0, 0)),   # x
                pl.BlockSpec((1, C), lambda b, g: (0, 0)),            # ln1 gamma
                pl.BlockSpec((1, C), lambda b, g: (0, 0)),            # ln1 beta
                pl.BlockSpec((G, C, Gw), lambda b, g: (0, 0, 0)),     # Wq (bf16)
                pl.BlockSpec((G, C, Gw), lambda b, g: (0, 0, 0)),     # Wk (bf16)
                pl.BlockSpec((G, C, Gw), lambda b, g: (0, 0, 0)),     # Wv (bf16)
                pl.BlockSpec((G, Gw, C), lambda b, g: (0, 0, 0)),     # Wproj (bf16)
                pl.BlockSpec((1, C), lambda b, g: (0, 0)),            # b_proj
            ],
            out_specs=pl.BlockSpec((None, N, C), lambda b, g: (b, 0, 0)),
            scratch_shapes=[
                pltpu.VMEM((N, C), compute_dtype),    # LN1(x), reused per group
                pltpu.VMEM((N, Gw), jnp.float32),     # packed per-head outputs
                pltpu.VMEM((N, C), jnp.float32),      # f32 head accumulator
            ],
        ),
        compiler_params=pltpu.CompilerParams(
            dimension_semantics=("parallel", "arbitrary"),
            vmem_limit_bytes=vmem_limit),
    )(x, params["ln1_g"], params["ln1_b"], wq, wk, wv, w_proj, params["b_proj"])

    # ---------------- stage 2: out = x1 + MLP(LN2(x1)) ----------------
    rows = B * N
    tn = min(256, rows)                      # fixed tile; cdiv grid masks ragged tail
    x1_flat = x1.reshape(rows, C)

    mlp_kernel = functools.partial(_mlp_kernel, eps=eps,
                                   compute_dtype=compute_dtype)
    out_flat = pl.pallas_call(
        mlp_kernel,
        out_shape=jax.ShapeDtypeStruct((rows, C), x.dtype),
        grid_spec=pltpu.PrefetchScalarGridSpec(
            num_scalar_prefetch=0,
            grid=(pl.cdiv(rows, tn),),
            in_specs=[
                pl.BlockSpec((tn, C), lambda i: (i, 0)),        # x1 row tile
                pl.BlockSpec((1, C), lambda i: (0, 0)),         # ln2 gamma
                pl.BlockSpec((1, C), lambda i: (0, 0)),         # ln2 beta
                pl.BlockSpec((C, Hm), lambda i: (0, 0)),        # w_fc1 (bf16)
                pl.BlockSpec((1, Hm), lambda i: (0, 0)),        # b_fc1
                pl.BlockSpec((Hm, C), lambda i: (0, 0)),        # w_fc2 (bf16)
                pl.BlockSpec((1, C), lambda i: (0, 0)),         # b_fc2
            ],
            out_specs=pl.BlockSpec((tn, C), lambda i: (i, 0)),
        ),
        compiler_params=pltpu.CompilerParams(
            dimension_semantics=("parallel",),
            vmem_limit_bytes=vmem_limit),
    )(x1_flat, params["ln2_g"], params["ln2_b"],
      w_fc1, params["b_fc1"], w_fc2, params["b_fc2"])

    return out_flat.reshape(B, N, C)


# ----------------- pure-JAX reference (for verification) -----------------
def reference_block(x, params, *, num_heads, eps=1e-5, compute_dtype=jnp.float32):
    """compute_dtype=float32  -> exact PyTorch-module semantics.
       compute_dtype=bfloat16 -> mirrors the kernel's bf16 matmul operands
                                 (f32 accumulation) for a tight comparison."""
    B, N, C = x.shape
    hd = C // num_heads
    scale = float(hd) ** -0.5
    cdt = compute_dtype
    f32 = jnp.float32

    def ln(v, g, b):
        mu = jnp.mean(v, axis=-1, keepdims=True)
        var = jnp.mean(jnp.square(v - mu), axis=-1, keepdims=True)
        return (v - mu) * jax.lax.rsqrt(var + eps) * g + b

    w_qkv = params["w_qkv"].at[:, :C].multiply(scale).astype(cdt)

    xn = ln(x, params["ln1_g"], params["ln1_b"])
    qkv = jnp.dot(xn.astype(cdt), w_qkv, preferred_element_type=f32)     # (B,N,3C)
    qkv = qkv.reshape(B, N, 3, num_heads, hd).transpose(2, 0, 3, 1, 4)
    q, k, v = (a.astype(cdt) for a in (qkv[0], qkv[1], qkv[2]))          # (B,H,N,hd)
    s = jnp.einsum("bhqd,bhkd->bhqk", q, k, preferred_element_type=f32)
    s = s - jnp.max(s, axis=-1, keepdims=True)
    p = jnp.exp(s)
    p = p / jnp.sum(p, axis=-1, keepdims=True)
    o = jnp.einsum("bhqk,bhkd->bhqd", p.astype(cdt), v, preferred_element_type=f32)
    o = o.transpose(0, 2, 1, 3).reshape(B, N, C)
    attn = jnp.dot(o.astype(cdt), params["w_proj"].astype(cdt),
                   preferred_element_type=f32) + params["b_proj"][0]
    x1 = x + attn

    x1n = ln(x1, params["ln2_g"], params["ln2_b"])
    h = jnp.dot(x1n.astype(cdt), params["w_fc1"].astype(cdt),
                preferred_element_type=f32) + params["b_fc1"][0]
    h = h * (0.5 * (1.0 + jax.lax.erf(h * _INV_SQRT2)))
    h2 = jnp.dot(h.astype(cdt), params["w_fc2"].astype(cdt),
                 preferred_element_type=f32) + params["b_fc2"][0]
    return x1 + h2


if __name__ == "__main__":
    # Small ViT-block shapes: batch=2, tokens=64, dim=64, heads=4, mlp_ratio=4
    B, N, C = 2, 64, 64
    num_heads = 4
    Hm = int(C * 4.0)

    key = jax.random.PRNGKey(0)
    ks = jax.random.split(key, 12)

    params = {
        "ln1_g": 1.0 + 0.1 * jax.random.normal(ks[0], (1, C), jnp.float32),
        "ln1_b": 0.1 * jax.random.normal(ks[1], (1, C), jnp.float32),
        "w_qkv": 0.02 * jax.random.normal(ks[2], (C, 3 * C), jnp.float32),
        "w_proj": 0.02 * jax.random.normal(ks[3], (C, C), jnp.float32),
        "b_proj": 0.02 * jax.random.normal(ks[4], (1, C), jnp.float32),
        "ln2_g": 1.0 + 0.1 * jax.random.normal(ks[5], (1, C), jnp.float32),
        "ln2_b": 0.1 * jax.random.normal(ks[6], (1, C), jnp.float32),
        "w_fc1": 0.02 * jax.random.normal(ks[7], (C, Hm), jnp.float32),
        "b_fc1": 0.02 * jax.random.normal(ks[8], (1, Hm), jnp.float32),
        "w_fc2": 0.02 * jax.random.normal(ks[9], (Hm, C), jnp.float32),
        "b_fc2": 0.02 * jax.random.normal(ks[10], (1, C), jnp.float32),
    }

    x = jax.random.normal(ks[11], (B, N, C), jnp.float32)

    out = jax.block_until_ready(transformer_block(x, params, num_heads=num_heads))
    assert out.shape == (B, N, C)

    # Tight check vs a reference mirroring the kernel's bf16 matmul operands.
    ref_bf16 = reference_block(x, params, num_heads=num_heads,
                               compute_dtype=jnp.bfloat16)
    err_b = float(jnp.max(jnp.abs(out - ref_bf16)))
    assert jnp.allclose(out, ref_bf16, atol=5e-3, rtol=5e-3), \
        f"mismatch vs bf16-mirrored reference (max abs err {err_b})"

    # Looser check vs the exact float32 (PyTorch-semantics) reference.
    ref_f32 = reference_block(x, params, num_heads=num_heads,
                              compute_dtype=jnp.float32)
    err_f = float(jnp.max(jnp.abs(out - ref_f32)))
    assert jnp.allclose(out, ref_f32, atol=5e-2, rtol=5e-2), \
        f"mismatch vs f32 reference (max abs err {err_f})"

    print("KERNEL_OK")
</pallas_src>

<mosaic_0001>
module attributes {stable_mosaic.version = 11 : i64} {
  func.func @_attn_kernel(%arg0: i32, %arg1: i32, %arg2: memref<1x64x64xf32, #tpu.memory_space<vmem>>, %arg3: memref<1x64xf32, #tpu.memory_space<vmem>>, %arg4: memref<1x64xf32, #tpu.memory_space<vmem>>, %arg5: memref<1x64x64xbf16, #tpu.memory_space<vmem>>, %arg6: memref<1x64x64xbf16, #tpu.memory_space<vmem>>, %arg7: memref<1x64x64xbf16, #tpu.memory_space<vmem>>, %arg8: memref<1x64x64xbf16, #tpu.memory_space<vmem>>, %arg9: memref<1x64xf32, #tpu.memory_space<vmem>>, %arg10: memref<1x64x64xf32, #tpu.memory_space<vmem>>, %arg11: memref<64x64xbf16, #tpu.memory_space<vmem>>, %arg12: memref<64x64xf32, #tpu.memory_space<vmem>>, %arg13: memref<64x64xf32, #tpu.memory_space<vmem>>) attributes {dimension_semantics = [#tpu.dimension_semantics<parallel>, #tpu.dimension_semantics<arbitrary>], iteration_bounds = array<i64: 2, 1>, scalar_prefetch = 0 : i64, scratch_operands = 3 : i64, tpu.core_type = #tpu.core_type<tc>, window_params = [{transform_indices = @transform_0, window_bounds = array<i64: 1, 64, 64>}, {pipeline_mode = #tpu.pipeline_mode<synchronous>, transform_indices = @transform_1, window_bounds = array<i64: 1, 64>}, {pipeline_mode = #tpu.pipeline_mode<synchronous>, transform_indices = @transform_2, window_bounds = array<i64: 1, 64>}, {pipeline_mode = #tpu.pipeline_mode<synchronous>, transform_indices = @transform_3, window_bounds = array<i64: 1, 64, 64>}, {pipeline_mode = #tpu.pipeline_mode<synchronous>, transform_indices = @transform_4, window_bounds = array<i64: 1, 64, 64>}, {pipeline_mode = #tpu.pipeline_mode<synchronous>, transform_indices = @transform_5, window_bounds = array<i64: 1, 64, 64>}, {pipeline_mode = #tpu.pipeline_mode<synchronous>, transform_indices = @transform_6, window_bounds = array<i64: 1, 64, 64>}, {pipeline_mode = #tpu.pipeline_mode<synchronous>, transform_indices = @transform_7, window_bounds = array<i64: 1, 64>}, {transform_indices = @transform_8, window_bounds = array<i64: 1, 64, 64>}]} {
    %c0_i32 = arith.constant 0 : i32
    %0 = arith.cmpi eq, %arg1, %c0_i32 : i32
    %1 = arith.extui %0 : i1 to i32
    %c0_i32_0 = arith.constant 0 : i32
    %2 = arith.cmpi ne, %1, %c0_i32_0 : i32
    scf.if %2 {
      %c0_42 = arith.constant 0 : index
      %c0_43 = arith.constant 0 : index
      %c0_44 = arith.constant 0 : index
      %99 = vector.load %arg2[%c0_42, %c0_43, %c0_44] : memref<1x64x64xf32, #tpu.memory_space<vmem>>, vector<1x64x64xf32>
      %100 = vector.shape_cast %99 : vector<1x64x64xf32> to vector<64x64xf32>
      %c0_45 = arith.constant 0 : index
      %c0_46 = arith.constant 0 : index
      %101 = vector.load %arg3[%c0_45, %c0_46] : memref<1x64xf32, #tpu.memory_space<vmem>>, vector<1x64xf32>
      %c0_47 = arith.constant 0 : index
      %c0_48 = arith.constant 0 : index
      %102 = vector.load %arg4[%c0_47, %c0_48] : memref<1x64xf32, #tpu.memory_space<vmem>>, vector<1x64xf32>
      %cst_49 = arith.constant dense<0.000000e+00> : vector<64xf32>
      %103 = vector.multi_reduction <add>, %100, %cst_49 [1] : vector<64x64xf32> to vector<64xf32>
      %104 = vector.shape_cast %103 : vector<64xf32> to vector<64x1xf32>
      %cst_50 = arith.constant 6.400000e+01 : f32
      %105 = vector.broadcast %cst_50 : f32 to vector<64x1xf32>
      %106 = arith.divf %104, %105 : vector<64x1xf32>
      %107 = vector.broadcast %106 : vector<64x1xf32> to vector<64x64xf32>
      %108 = arith.subf %100, %107 : vector<64x64xf32>
      %109 = arith.mulf %108, %108 : vector<64x64xf32>
      %cst_51 = arith.constant dense<0.000000e+00> : vector<64xf32>
      %110 = vector.multi_reduction <add>, %109, %cst_51 [1] : vector<64x64xf32> to vector<64xf32>
      %111 = vector.shape_cast %110 : vector<64xf32> to vector<64x1xf32>
      %cst_52 = arith.constant 6.400000e+01 : f32
      %112 = vector.broadcast %cst_52 : f32 to vector<64x1xf32>
      %113 = arith.divf %111, %112 : vector<64x1xf32>
      %114 = vector.broadcast %106 : vector<64x1xf32> to vector<64x64xf32>
      %115 = arith.subf %100, %114 : vector<64x64xf32>
      %cst_53 = arith.constant 9.99999974E-6 : f32
      %116 = vector.broadcast %cst_53 : f32 to vector<64x1xf32>
      %117 = arith.addf %113, %116 : vector<64x1xf32>
      %118 = math.rsqrt %117 : vector<64x1xf32>
      %119 = vector.broadcast %118 : vector<64x1xf32> to vector<64x64xf32>
      %120 = arith.mulf %115, %119 : vector<64x64xf32>
      %121 = vector.broadcast %101 : vector<1x64xf32> to vector<64x64xf32>
      %122 = arith.mulf %120, %121 : vector<64x64xf32>
      %123 = vector.broadcast %102 : vector<1x64xf32> to vector<64x64xf32>
      %124 = arith.addf %122, %123 : vector<64x64xf32>
      %125 = arith.truncf %124 : vector<64x64xf32> to vector<64x64xbf16>
      %c0_54 = arith.constant 0 : index
      %c0_55 = arith.constant 0 : index
      %126 = vector.load %arg11[%c0_54, %c0_55] : memref<64x64xbf16, #tpu.memory_space<vmem>>, vector<64x64xbf16>
      tpu.vector_store %arg11[%c0_54, %c0_55], %125 {strides = array<i32>} : memref<64x64xbf16, #tpu.memory_space<vmem>>, vector<64x64xbf16>,
      %cst_56 = arith.constant 0.000000e+00 : f32
      %127 = vector.broadcast %cst_56 : f32 to vector<64x64xf32>
      %c0_57 = arith.constant 0 : index
      %c0_58 = arith.constant 0 : index
      %128 = vector.load %arg13[%c0_57, %c0_58] : memref<64x64xf32, #tpu.memory_space<vmem>>, vector<64x64xf32>
      tpu.vector_store %arg13[%c0_57, %c0_58], %127 {strides = array<i32>} : memref<64x64xf32, #tpu.memory_space<vmem>>, vector<64x64xf32>,
    } else {
    }
    %c0 = arith.constant 0 : index
    %c0_1 = arith.constant 0 : index
    %3 = vector.load %arg11[%c0, %c0_1] : memref<64x64xbf16, #tpu.memory_space<vmem>>, vector<64x64xbf16>
    %4 = arith.index_cast %arg1 : i32 to index
    %c0_2 = arith.constant 0 : index
    %c0_3 = arith.constant 0 : index
    %5 = vector.load %arg5[%4, %c0_2, %c0_3] : memref<1x64x64xbf16, #tpu.memory_space<vmem>>, vector<1x64x64xbf16>
    %6 = vector.shape_cast %5 : vector<1x64x64xbf16> to vector<64x64xbf16>
    %cst = arith.constant dense<0.000000e+00> : vector<64x64xf32>
    %7 = tpu.matmul %3, %6, %cst {dimension_numbers = #tpu.dot_dimension_numbers<[1], [0], [0], [1], [0, 0, 1, 1], [], []>} : vector<64x64xbf16>, vector<64x64xbf16>, vector<64x64xf32> -> vector<64x64xf32>
    %8 = arith.truncf %7 : vector<64x64xf32> to vector<64x64xbf16>
    %9 = arith.index_cast %arg1 : i32 to index
    %c0_4 = arith.constant 0 : index
    %c0_5 = arith.constant 0 : index
    %10 = vector.load %arg6[%9, %c0_4, %c0_5] : memref<1x64x64xbf16, #tpu.memory_space<vmem>>, vector<1x64x64xbf16>
    %11 = vector.shape_cast %10 : vector<1x64x64xbf16> to vector<64x64xbf16>
    %cst_6 = arith.constant dense<0.000000e+00> : vector<64x64xf32>
    %12 = tpu.matmul %3, %11, %cst_6 {dimension_numbers = #tpu.dot_dimension_numbers<[1], [0], [0], [1], [0, 0, 1, 1], [], []>} : vector<64x64xbf16>, vector<64x64xbf16>, vector<64x64xf32> -> vector<64x64xf32>
    %13 = arith.truncf %12 : vector<64x64xf32> to vector<64x64xbf16>
    %14 = arith.index_cast %arg1 : i32 to index
    %c0_7 = arith.constant 0 : index
    %c0_8 = arith.constant 0 : index
    %15 = vector.load %arg7[%14, %c0_7, %c0_8] : memref<1x64x64xbf16, #tpu.memory_space<vmem>>, vector<1x64x64xbf16>
    %16 = vector.shape_cast %15 : vector<1x64x64xbf16> to vector<64x64xbf16>
    %cst_9 = arith.constant dense<0.000000e+00> : vector<64x64xf32>
    %17 = tpu.matmul %3, %16, %cst_9 {dimension_numbers = #tpu.dot_dimension_numbers<[1], [0], [0], [1], [0, 0, 1, 1], [], []>} : vector<64x64xbf16>, vector<64x64xbf16>, vector<64x64xf32> -> vector<64x64xf32>
    %18 = arith.truncf %17 : vector<64x64xf32> to vector<64x64xbf16>
    %19 = vector.extract_strided_slice %8 {offsets = [0, 0], sizes = [64, 16], strides = [1, 1]} : vector<64x64xbf16> to vector<64x16xbf16>
    %20 = vector.extract_strided_slice %13 {offsets = [0, 0], sizes = [64, 16], strides = [1, 1]} : vector<64x64xbf16> to vector<64x16xbf16>
    %cst_10 = arith.constant dense<0.000000e+00> : vector<64x64xf32>
    %21 = tpu.matmul %19, %20, %cst_10 {dimension_numbers = #tpu.dot_dimension_numbers<[1], [1], [0], [0], [0, 0, 1, 0], [], []>} : vector<64x16xbf16>, vector<64x16xbf16>, vector<64x64xf32> -> vector<64x64xf32>
    %cst_11 = arith.constant dense<0xFF800000> : vector<64xf32>
    %22 = vector.multi_reduction <maximumf>, %21, %cst_11 [1] : vector<64x64xf32> to vector<64xf32>
    %23 = vector.shape_cast %22 : vector<64xf32> to vector<64x1xf32>
    %24 = vector.broadcast %23 : vector<64x1xf32> to vector<64x64xf32>
    %25 = arith.subf %21, %24 : vector<64x64xf32>
    %26 = math.exp %25 : vector<64x64xf32>
    %cst_12 = arith.constant dense<0.000000e+00> : vector<64xf32>
    %27 = vector.multi_reduction <add>, %26, %cst_12 [1] : vector<64x64xf32> to vector<64xf32>
    %28 = vector.shape_cast %27 : vector<64xf32> to vector<64x1xf32>
    %29 = tpu.reciprocal %28 {approx = true} : vector<64x1xf32> -> vector<64x1xf32>
    %30 = vector.broadcast %29 : vector<64x1xf32> to vector<64x64xf32>
    %31 = arith.mulf %26, %30 : vector<64x64xf32>
    %32 = arith.truncf %31 : vector<64x64xf32> to vector<64x64xbf16>
    %33 = vector.extract_strided_slice %18 {offsets = [0, 0], sizes = [64, 16], strides = [1, 1]} : vector<64x64xbf16> to vector<64x16xbf16>
    %cst_13 = arith.constant dense<0.000000e+00> : vector<64x16xf32>
    %34 = tpu.matmul %32, %33, %cst_13 {dimension_numbers = #tpu.dot_dimension_numbers<[1], [0], [0], [1], [0, 0, 1, 1], [], []>} : vector<64x64xbf16>, vector<64x16xbf16>, vector<64x16xf32> -> vector<64x16xf32>
    %c0_14 = arith.constant 0 : index
    %c0_15 = arith.constant 0 : index
    %35 = vector.load %arg12[%c0_14, %c0_15] : memref<64x64xf32, #tpu.memory_space<vmem>>, vector<64x16xf32>
    tpu.vector_store %arg12[%c0_14, %c0_15], %34 {strides = array<i32>} : memref<64x64xf32, #tpu.memory_space<vmem>>, vector<64x16xf32>,
    %36 = vector.extract_strided_slice %8 {offsets = [0, 16], sizes = [64, 16], strides = [1, 1]} : vector<64x64xbf16> to vector<64x16xbf16>
    %37 = vector.extract_strided_slice %13 {offsets = [0, 16], sizes = [64, 16], strides = [1, 1]} : vector<64x64xbf16> to vector<64x16xbf16>
    %cst_16 = arith.constant dense<0.000000e+00> : vector<64x64xf32>
    %38 = tpu.matmul %36, %37, %cst_16 {dimension_numbers = #tpu.dot_dimension_numbers<[1], [1], [0], [0], [0, 0, 1, 0], [], []>} : vector<64x16xbf16>, vector<64x16xbf16>, vector<64x64xf32> -> vector<64x64xf32>
    %cst_17 = arith.constant dense<0xFF800000> : vector<64xf32>
    %39 = vector.multi_reduction <maximumf>, %38, %cst_17 [1] : vector<64x64xf32> to vector<64xf32>
    %40 = vector.shape_cast %39 : vector<64xf32> to vector<64x1xf32>
    %41 = vector.broadcast %40 : vector<64x1xf32> to vector<64x64xf32>
    %42 = arith.subf %38, %41 : vector<64x64xf32>
    %43 = math.exp %42 : vector<64x64xf32>
    %cst_18 = arith.constant dense<0.000000e+00> : vector<64xf32>
    %44 = vector.multi_reduction <add>, %43, %cst_18 [1] : vector<64x64xf32> to vector<64xf32>
    %45 = vector.shape_cast %44 : vector<64xf32> to vector<64x1xf32>
    %46 = tpu.reciprocal %45 {approx = true} : vector<64x1xf32> -> vector<64x1xf32>
    %47 = vector.broadcast %46 : vector<64x1xf32> to vector<64x64xf32>
    %48 = arith.mulf %43, %47 : vector<64x64xf32>
    %49 = arith.truncf %48 : vector<64x64xf32> to vector<64x64xbf16>
    %50 = vector.extract_strided_slice %18 {offsets = [0, 16], sizes = [64, 16], strides = [1, 1]} : vector<64x64xbf16> to vector<64x16xbf16>
    %cst_19 = arith.constant dense<0.000000e+00> : vector<64x16xf32>
    %51 = tpu.matmul %49, %50, %cst_19 {dimension_numbers = #tpu.dot_dimension_numbers<[1], [0], [0], [1], [0, 0, 1, 1], [], []>} : vector<64x64xbf16>, vector<64x16xbf16>, vector<64x16xf32> -> vector<64x16xf32>
    %c0_20 = arith.constant 0 : index
    %c16 = arith.constant 16 : index
    %52 = vector.load %arg12[%c0_20, %c16] : memref<64x64xf32, #tpu.memory_space<vmem>>, vector<64x16xf32>
    tpu.vector_store %arg12[%c0_20, %c16], %51 {strides = array<i32>} : memref<64x64xf32, #tpu.memory_space<vmem>>, vector<64x16xf32>,
    %53 = vector.extract_strided_slice %8 {offsets = [0, 32], sizes = [64, 16], strides = [1, 1]} : vector<64x64xbf16> to vector<64x16xbf16>
    %54 = vector.extract_strided_slice %13 {offsets = [0, 32], sizes = [64, 16], strides = [1, 1]} : vector<64x64xbf16> to vector<64x16xbf16>
    %cst_21 = arith.constant dense<0.000000e+00> : vector<64x64xf32>
    %55 = tpu.matmul %53, %54, %cst_21 {dimension_numbers = #tpu.dot_dimension_numbers<[1], [1], [0], [0], [0, 0, 1, 0], [], []>} : vector<64x16xbf16>, vector<64x16xbf16>, vector<64x64xf32> -> vector<64x64xf32>
    %cst_22 = arith.constant dense<0xFF800000> : vector<64xf32>
    %56 = vector.multi_reduction <maximumf>, %55, %cst_22 [1] : vector<64x64xf32> to vector<64xf32>
    %57 = vector.shape_cast %56 : vector<64xf32> to vector<64x1xf32>
    %58 = vector.broadcast %57 : vector<64x1xf32> to vector<64x64xf32>
    %59 = arith.subf %55, %58 : vector<64x64xf32>
    %60 = math.exp %59 : vector<64x64xf32>
    %cst_23 = arith.constant dense<0.000000e+00> : vector<64xf32>
    %61 = vector.multi_reduction <add>, %60, %cst_23 [1] : vector<64x64xf32> to vector<64xf32>
    %62 = vector.shape_cast %61 : vector<64xf32> to vector<64x1xf32>
    %63 = tpu.reciprocal %62 {approx = true} : vector<64x1xf32> -> vector<64x1xf32>
    %64 = vector.broadcast %63 : vector<64x1xf32> to vector<64x64xf32>
    %65 = arith.mulf %60, %64 : vector<64x64xf32>
    %66 = arith.truncf %65 : vector<64x64xf32> to vector<64x64xbf16>
    %67 = vector.extract_strided_slice %18 {offsets = [0, 32], sizes = [64, 16], strides = [1, 1]} : vector<64x64xbf16> to vector<64x16xbf16>
    %cst_24 = arith.constant dense<0.000000e+00> : vector<64x16xf32>
    %68 = tpu.matmul %66, %67, %cst_24 {dimension_numbers = #tpu.dot_dimension_numbers<[1], [0], [0], [1], [0, 0, 1, 1], [], []>} : vector<64x64xbf16>, vector<64x16xbf16>, vector<64x16xf32> -> vector<64x16xf32>
    %c0_25 = arith.constant 0 : index
    %c32 = arith.constant 32 : index
    %69 = vector.load %arg12[%c0_25, %c32] : memref<64x64xf32, #tpu.memory_space<vmem>>, vector<64x16xf32>
    tpu.vector_store %arg12[%c0_25, %c32], %68 {strides = array<i32>} : memref<64x64xf32, #tpu.memory_space<vmem>>, vector<64x16xf32>,
    %70 = vector.extract_strided_slice %8 {offsets = [0, 48], sizes = [64, 16], strides = [1, 1]} : vector<64x64xbf16> to vector<64x16xbf16>
    %71 = vector.extract_strided_slice %13 {offsets = [0, 48], sizes = [64, 16], strides = [1, 1]} : vector<64x64xbf16> to vector<64x16xbf16>
    %cst_26 = arith.constant dense<0.000000e+00> : vector<64x64xf32>
    %72 = tpu.matmul %70, %71, %cst_26 {dimension_numbers = #tpu.dot_dimension_numbers<[1], [1], [0], [0], [0, 0, 1, 0], [], []>} : vector<64x16xbf16>, vector<64x16xbf16>, vector<64x64xf32> -> vector<64x64xf32>
    %cst_27 = arith.constant dense<0xFF800000> : vector<64xf32>
    %73 = vector.multi_reduction <maximumf>, %72, %cst_27 [1] : vector<64x64xf32> to vector<64xf32>
    %74 = vector.shape_cast %73 : vector<64xf32> to vector<64x1xf32>
    %75 = vector.broadcast %74 : vector<64x1xf32> to vector<64x64xf32>
    %76 = arith.subf %72, %75 : vector<64x64xf32>
    %77 = math.exp %76 : vector<64x64xf32>
    %cst_28 = arith.constant dense<0.000000e+00> : vector<64xf32>
    %78 = vector.multi_reduction <add>, %77, %cst_28 [1] : vector<64x64xf32> to vector<64xf32>
    %79 = vector.shape_cast %78 : vector<64xf32> to vector<64x1xf32>
    %80 = tpu.reciprocal %79 {approx = true} : vector<64x1xf32> -> vector<64x1xf32>
    %81 = vector.broadcast %80 : vector<64x1xf32> to vector<64x64xf32>
    %82 = arith.mulf %77, %81 : vector<64x64xf32>
    %83 = arith.truncf %82 : vector<64x64xf32> to vector<64x64xbf16>
    %84 = vector.extract_strided_slice %18 {offsets = [0, 48], sizes = [64, 16], strides = [1, 1]} : vector<64x64xbf16> to vector<64x16xbf16>
    %cst_29 = arith.constant dense<0.000000e+00> : vector<64x16xf32>
    %85 = tpu.matmul %83, %84, %cst_29 {dimension_numbers = #tpu.dot_dimension_numbers<[1], [0], [0], [1], [0, 0, 1, 1], [], []>} : vector<64x64xbf16>, vector<64x16xbf16>, vector<64x16xf32> -> vector<64x16xf32>
    %c0_30 = arith.constant 0 : index
    %c48 = arith.constant 48 : index
    %86 = vector.load %arg12[%c0_30, %c48] : memref<64x64xf32, #tpu.memory_space<vmem>>, vector<64x16xf32>
    tpu.vector_store %arg12[%c0_30, %c48], %85 {strides = array<i32>} : memref<64x64xf32, #tpu.memory_space<vmem>>, vector<64x16xf32>,
    %c0_31 = arith.constant 0 : index
    %c0_32 = arith.constant 0 : index
    %87 = vector.load %arg13[%c0_31, %c0_32] : memref<64x64xf32, #tpu.memory_space<vmem>>, vector<64x64xf32>
    %c0_33 = arith.constant 0 : index
    %c0_34 = arith.constant 0 : index
    %88 = vector.load %arg12[%c0_33, %c0_34] : memref<64x64xf32, #tpu.memory_space<vmem>>, vector<64x64xf32>
    %89 = arith.truncf %88 : vector<64x64xf32> to vector<64x64xbf16>
    %90 = arith.index_cast %arg1 : i32 to index
    %c0_35 = arith.constant 0 : index
    %c0_36 = arith.constant 0 : index
    %91 = vector.load %arg8[%90, %c0_35, %c0_36] : memref<1x64x64xbf16, #tpu.memory_space<vmem>>, vector<1x64x64xbf16>
    %92 = vector.shape_cast %91 : vector<1x64x64xbf16> to vector<64x64xbf16>
    %cst_37 = arith.constant dense<0.000000e+00> : vector<64x64xf32>
    %93 = tpu.matmul %89, %92, %cst_37 {dimension_numbers = #tpu.dot_dimension_numbers<[1], [0], [0], [1], [0, 0, 1, 1], [], []>} : vector<64x64xbf16>, vector<64x64xbf16>, vector<64x64xf32> -> vector<64x64xf32>
    %94 = arith.addf %87, %93 : vector<64x64xf32>
    %c0_38 = arith.constant 0 : index
    %c0_39 = arith.constant 0 : index
    %95 = vector.load %arg13[%c0_38, %c0_39] : memref<64x64xf32, #tpu.memory_space<vmem>>, vector<64x64xf32>
    tpu.vector_store %arg13[%c0_38, %c0_39], %94 {strides = array<i32>} : memref<64x64xf32, #tpu.memory_space<vmem>>, vector<64x64xf32>,
    %c0_i32_40 = arith.constant 0 : i32
    %96 = arith.cmpi eq, %arg1, %c0_i32_40 : i32
    %97 = arith.extui %96 : i1 to i32
    %c0_i32_41 = arith.constant 0 : i32
    %98 = arith.cmpi ne, %97, %c0_i32_41 : i32
    scf.if %98 {
      %c0_42 = arith.constant 0 : index
      %c0_43 = arith.constant 0 : index
      %c0_44 = arith.constant 0 : index
      %99 = vector.load %arg2[%c0_42, %c0_43, %c0_44] : memref<1x64x64xf32, #tpu.memory_space<vmem>>, vector<1x64x64xf32>
      %100 = vector.shape_cast %99 : vector<1x64x64xf32> to vector<64x64xf32>
      %c0_45 = arith.constant 0 : index
      %c0_46 = arith.constant 0 : index
      %101 = vector.load %arg9[%c0_45, %c0_46] : memref<1x64xf32, #tpu.memory_space<vmem>>, vector<1x64xf32>
      %102 = vector.broadcast %101 : vector<1x64xf32> to vector<64x64xf32>
      %103 = arith.addf %100, %102 : vector<64x64xf32>
      %c0_47 = arith.constant 0 : index
      %c0_48 = arith.constant 0 : index
      %104 = vector.load %arg13[%c0_47, %c0_48] : memref<64x64xf32, #tpu.memory_space<vmem>>, vector<64x64xf32>
      %105 = arith.addf %103, %104 : vector<64x64xf32>
      %c0_49 = arith.constant 0 : index
      %c0_50 = arith.constant 0 : index
      %c0_51 = arith.constant 0 : index
      %106 = vector.load %arg10[%c0_49, %c0_50, %c0_51] : memref<1x64x64xf32, #tpu.memory_space<vmem>>, vector<1x64x64xf32>
      %107 = vector.shape_cast %106 : vector<1x64x64xf32> to vector<64x64xf32>
      %108 = vector.shape_cast %105 : vector<64x64xf32> to vector<1x64x64xf32>
      tpu.vector_store %arg10[%c0_49, %c0_50, %c0_51], %108 {strides = array<i32>} : memref<1x64x64xf32, #tpu.memory_space<vmem>>, vector<1x64x64xf32>,
    } else {
    }
    return
  }
  func.func @transform_0(%arg0: i32, %arg1: i32) -> (i32, i32, i32) {
    %c0_i32 = arith.constant 0 : i32
    %c0_i32_0 = arith.constant 0 : i32
    %c0_i32_1 = arith.constant 0 : i32
    return %arg0, %c0_i32, %c0_i32_0 : i32, i32, i32
  }
  func.func @transform_1(%arg0: i32, %arg1: i32) -> (i32, i32) {
    %c0_i32 = arith.constant 0 : i32
    %c0_i32_0 = arith.constant 0 : i32
    %c0_i32_1 = arith.constant 0 : i32
    return %c0_i32, %c0_i32_0 : i32, i32
  }
  func.func @transform_2(%arg0: i32, %arg1: i32) -> (i32, i32) {
    %c0_i32 = arith.constant 0 : i32
    %c0_i32_0 = arith.constant 0 : i32
    %c0_i32_1 = arith.constant 0 : i32
    return %c0_i32, %c0_i32_0 : i32, i32
  }
  func.func @transform_3(%arg0: i32, %arg1: i32) -> (i32, i32, i32) {
    %c0_i32 = arith.constant 0 : i32
    %c0_i32_0 = arith.constant 0 : i32
    %c0_i32_1 = arith.constant 0 : i32
    %c0_i32_2 = arith.constant 0 : i32
    return %c0_i32, %c0_i32_0, %c0_i32_1 : i32, i32, i32
  }
  func.func @transform_4(%arg0: i32, %arg1: i32) -> (i32, i32, i32) {
    %c0_i32 = arith.constant 0 : i32
    %c0_i32_0 = arith.constant 0 : i32
    %c0_i32_1 = arith.constant 0 : i32
    %c0_i32_2 = arith.constant 0 : i32
    return %c0_i32, %c0_i32_0, %c0_i32_1 : i32, i32, i32
  }
  func.func @transform_5(%arg0: i32, %arg1: i32) -> (i32, i32, i32) {
    %c0_i32 = arith.constant 0 : i32
    %c0_i32_0 = arith.constant 0 : i32
    %c0_i32_1 = arith.constant 0 : i32
    %c0_i32_2 = arith.constant 0 : i32
    return %c0_i32, %c0_i32_0, %c0_i32_1 : i32, i32, i32
  }
  func.func @transform_6(%arg0: i32, %arg1: i32) -> (i32, i32, i32) {
    %c0_i32 = arith.constant 0 : i32
    %c0_i32_0 = arith.constant 0 : i32
    %c0_i32_1 = arith.constant 0 : i32
    %c0_i32_2 = arith.constant 0 : i32
    return %c0_i32, %c0_i32_0, %c0_i32_1 : i32, i32, i32
  }
  func.func @transform_7(%arg0: i32, %arg1: i32) -> (i32, i32) {
    %c0_i32 = arith.constant 0 : i32
    %c0_i32_0 = arith.constant 0 : i32
    %c0_i32_1 = arith.constant 0 : i32
    return %c0_i32, %c0_i32_0 : i32, i32
  }
  func.func @transform_8(%arg0: i32, %arg1: i32) -> (i32, i32, i32) {
    %c0_i32 = arith.constant 0 : i32
    %c0_i32_0 = arith.constant 0 : i32
    %c0_i32_1 = arith.constant 0 : i32
    return %arg0, %c0_i32, %c0_i32_0 : i32, i32, i32
  }
}

</mosaic_0001>

<llo_original>
// kernel: tpu_custom_call.1
$region0: #{tpu_custom_call.1}
  #allocation0 [shape = 'u32[]', space=smem, size = 0x4, offset = 0x4, fixed_abs, tag = 'smem constant byte address 0x4 - core index']
  #allocation1 [shape = 'u32[144,128]{1,0:T(1,128)}', space=vmem, size = 0x12000, scoped, tag = 'internal scratch']
  #allocation2 [shape = 'bf16[64,64]{1,0:T(16,128)(2,1)}', space=vmem, size = 0x4000, scoped, tag = 'scratch operand']
  #allocation3 [shape = 'f32[64,64]{1,0:T(8,128)}', space=vmem, size = 0x8000, scoped, tag = 'scratch operand']
  #allocation4 [shape = 'f32[64,64]{1,0:T(8,128)}', space=vmem, size = 0x8000, scoped, tag = 'scratch operand']
  %s0 = inlined_call_operand.hbm [shape: f32[2,64,64], index: 0, kind: input, shape index: {}]
  %s1 = inlined_call_operand.vmem [shape: f32[1,64], index: 1, kind: input, shape index: {}]
  %s2 = inlined_call_operand.vmem [shape: f32[1,64], index: 2, kind: input, shape index: {}]
  %s3 = inlined_call_operand.hbm [shape: bf16[1,64,64], index: 3, kind: input, shape index: {}]
  %s4 = inlined_call_operand.hbm [shape: bf16[1,64,64], index: 4, kind: input, shape index: {}]
  %s5 = inlined_call_operand.hbm [shape: bf16[1,64,64], index: 5, kind: input, shape index: {}]
  %s6 = inlined_call_operand.hbm [shape: bf16[1,64,64], index: 6, kind: input, shape index: {}]
  %s7 = inlined_call_operand.vmem [shape: f32[1,64], index: 7, kind: input, shape index: {}]
  %s8 = inlined_call_operand.hbm [shape: f32[2,64,64], index: 8, kind: output, shape index: {}]
  %s9 = sld [smem:[#allocation0]]
  $region93: #{tpu_custom_call.1} parent=0
    _
  %s11 = ssub.s32 1, %s9
  %s12 = scalar_select 0, %s11, %s9
  $region1: #{tpu_custom_call.1} parent=0
    #allocation5 [shape = 'u8[65536]{0}', space=vmem, size = 0x10000, scoped, tag = 'input window, operand 0']
    #allocation6 [shape = 's32[2]{0}', space=sflag, size = 0x8, scoped, tag = 'scoped memory for tpu_custom_call.1']
    #allocation7 [shape = 's32[2]{0}', space=sflag, size = 0x8, scoped, tag = 'scoped memory for tpu_custom_call.1']
    #allocation8 [shape = 'u8[16384]{0}', space=vmem, size = 0x4000, scoped, tag = 'input window, operand 3, single buffered']
    #allocation9 [shape = 's32[1]{0}', space=sflag, size = 0x4, scoped, tag = 'scoped memory for tpu_custom_call.1']
    #allocation10 [shape = 'u8[16384]{0}', space=vmem, size = 0x4000, scoped, tag = 'input window, operand 4, single buffered']
    #allocation11 [shape = 'u8[16384]{0}', space=vmem, size = 0x4000, scoped, tag = 'input window, operand 5, single buffered']
    #allocation12 [shape = 's32[1]{0}', space=sflag, size = 0x4, scoped, tag = 'scoped memory for tpu_custom_call.1']
    #allocation13 [shape = 'u8[16384]{0}', space=vmem, size = 0x4000, scoped, tag = 'input window, operand 6, single buffered']
    #allocation14 [shape = 'u8[65536]{0}', space=vmem, size = 0x10000, scoped, tag = 'output window, operand 0']
    %13 = vsyncpa [#allocation6], 0
    %s14 = scalar_lea.sflag [#allocation6], 1
    %15 = vsyncpa %s14, 0
    %16 = vsyncpa [#allocation9], 0
    %17 = vsyncpa [#allocation12], 0
    %18 = vsyncpa [#allocation7], 0
    %s19 = scalar_lea.sflag [#allocation7], 1
    %20 = vsyncpa %s19, 0
    loop: start=0, step=1, limit=4
    $region2: #{tpu_custom_call.1} parent=1 // loop_pre_header
      _
    $region3: #{tpu_custom_call.1} parent=1 // loop_header
      %s22 = sphi 0, %s26
      %p23 = scmp.ge.s32.totalorder %s22, 4
      %s29 = sphi 0, %s41
      %s30 = sphi 0, %s37
      %s31 = sphi 0, %s29
      %s32 = sphi 0, %s30
      %s33 = sphi 0, %s31
      %s34 = sphi 0, %s32
      %s44 = sphi 0, %s46
      %s47 = sphi 0, %s44
      %s48 = sphi 0, %s47
      %s64 = sphi 0, %s48
      %s68 = sphi 0, %s68
      %s70 = sphi 0, %s68
      %s71 = sphi 0, %s70
      %s85 = sphi 0, %s71
      %s89 = sphi 0, %s89
      %s91 = sphi 0, %s89
      %s92 = sphi 0, %s91
      %s106 = sphi 0, %s92
      %s110 = sphi 0, %s110
      %s112 = sphi 0, %s110
      %s113 = sphi 0, %s112
      %s127 = sphi 0, %s113
      %s131 = sphi 0, %s131
      %s133 = sphi 0, %s131
      %s134 = sphi 0, %s133
      %s148 = sphi 0, %s134
      %s152 = sphi 0, %s152
      %s154 = sphi 0, %s152
      %s155 = sphi 0, %s154
      %s169 = sphi 0, %s155
      %s173 = sphi 0, %s173
      %s175 = sphi 0, %s173
      %s176 = sphi 0, %s175
      %s190 = sphi 0, %s176
      %s194 = sphi 0, %s194
      %s196 = sphi 0, %s194
      %s197 = sphi 0, %s196
      %s211 = sphi 0, %s197
      %s217 = sphi 0, %s219
      %s220 = sphi 0, %s217
      %s221 = sphi 0, %s220
      %s237 = sphi 0, %s221
    $region4: #{tpu_custom_call.1} parent=1 // loop_header_branch
      %25 = sbr.rel (%p23) target = $region8
    $region5: #{tpu_custom_call.1} parent=1 // loop_body
      %s27 = ssub.s32 %s22, 1
      %s28 = ssub.s32 %s22, 2
      %s35 = sadd.s32 1, %s30
      %p36 = scmp.ge.s32.totalorder %s35, 1
      %s37 = scalar_select %p36, 0, %s35
      %s38 = sadd.s32 1, %s29
      %s39 = scalar_select %p36, %s38, %s29
      %p40 = scmp.ge.s32.totalorder %s39, 2
      %s41 = scalar_select %p40, 0, %s39
      %s42 = ssub.s32 %s29, %s41
      %p43 = scmp.eq.s32.totalorder %s42, 0
      %s45 = sadd.s32 %s44, 1
      %s46 = scalar_select %p43, %s44, %s45
      %p49 = pneg %p43
      %p50 = scmp.eq.s32.totalorder %s22, 1
      %p51 = por %p49, %p50
      %p52 = scmp.ne.s32.totalorder %s44, %s47
      %p53 = scmp.eq.s32.totalorder %s22, 0
      %p54 = por %p52, %p53
      %p55 = scmp.ne.s32.totalorder %s44, %s47
      %p56 = scmp.eq.s32.totalorder %s27, 1
      %p57 = por %p55, %p56
      %p58 = scmp.ne.s32.totalorder %s47, %s48
      %p59 = scmp.eq.s32.totalorder %s27, 0
      %p60 = por %p58, %p59
      %p61 = scmp.ne.s32.totalorder %s47, %s48
      %p62 = scmp.eq.s32.totalorder %s28, 1
      %p63 = por %p61, %p62
      %p65 = scmp.ne.s32.totalorder %s48, %s64
      %p66 = scmp.eq.s32.totalorder %s28, 0
      %p67 = por %p65, %p66
      %s69 = sadd.s32 %s68, 1
      %p72 = scmp.eq.s32.totalorder %s22, 1
      %p73 = scmp.ne.s32.totalorder %s68, %s70
      %p74 = scmp.eq.s32.totalorder %s22, 0
      %p75 = por %p73, %p74
      %p76 = scmp.ne.s32.totalorder %s68, %s70
      %p77 = scmp.eq.s32.totalorder %s27, 1
      %p78 = por %p76, %p77
      %p79 = scmp.ne.s32.totalorder %s70, %s71
      %p80 = scmp.eq.s32.totalorder %s27, 0
      %p81 = por %p79, %p80
      %p82 = scmp.ne.s32.totalorder %s70, %s71
      %p83 = scmp.eq.s32.totalorder %s28, 1
      %p84 = por %p82, %p83
      %p86 = scmp.ne.s32.totalorder %s71, %s85
      %p87 = scmp.eq.s32.totalorder %s28, 0
      %p88 = por %p86, %p87
      %s90 = sadd.s32 %s89, 1
      %p93 = scmp.eq.s32.totalorder %s22, 1
      %p94 = scmp.ne.s32.totalorder %s89, %s91
      %p95 = scmp.eq.s32.totalorder %s22, 0
      %p96 = por %p94, %p95
      %p97 = scmp.ne.s32.totalorder %s89, %s91
      %p98 = scmp.eq.s32.totalorder %s27, 1
      %p99 = por %p97, %p98
      %p100 = scmp.ne.s32.totalorder %s91, %s92
      %p101 = scmp.eq.s32.totalorder %s27, 0
      %p102 = por %p100, %p101
      %p103 = scmp.ne.s32.totalorder %s91, %s92
      %p104 = scmp.eq.s32.totalorder %s28, 1
      %p105 = por %p103, %p104
      %p107 = scmp.ne.s32.totalorder %s92, %s106
      %p108 = scmp.eq.s32.totalorder %s28, 0
      %p109 = por %p107, %p108
      %s111 = sadd.s32 %s110, 1
      %p114 = scmp.eq.s32.totalorder %s22, 1
      %p115 = scmp.ne.s32.totalorder %s110, %s112
      %p116 = scmp.eq.s32.totalorder %s22, 0
      %p117 = por %p115, %p116
      %p118 = scmp.ne.s32.totalorder %s110, %s112
      %p119 = scmp.eq.s32.totalorder %s27, 1
      %p120 = por %p118, %p119
      %p121 = scmp.ne.s32.totalorder %s112, %s113
      %p122 = scmp.eq.s32.totalorder %s27, 0
      %p123 = por %p121, %p122
      %p124 = scmp.ne.s32.totalorder %s112, %s113
      %p125 = scmp.eq.s32.totalorder %s28, 1
      %p126 = por %p124, %p125
      %p128 = scmp.ne.s32.totalorder %s113, %s127
      %p129 = scmp.eq.s32.totalorder %s28, 0
      %p130 = por %p128, %p129
      %s132 = sadd.s32 %s131, 1
      %p135 = scmp.eq.s32.totalorder %s22, 1
      %p136 = scmp.ne.s32.totalorder %s131, %s133
      %p137 = scmp.eq.s32.totalorder %s22, 0
      %p138 = por %p136, %p137
      %p139 = scmp.ne.s32.totalorder %s131, %s133
      %p140 = scmp.eq.s32.totalorder %s27, 1
      %p141 = por %p139, %p140
      %p142 = scmp.ne.s32.totalorder %s133, %s134
      %p143 = scmp.eq.s32.totalorder %s27, 0
      %p144 = por %p142, %p143
      %p145 = scmp.ne.s32.totalorder %s133, %s134
      %p146 = scmp.eq.s32.totalorder %s28, 1
      %p147 = por %p145, %p146
      %p149 = scmp.ne.s32.totalorder %s134, %s148
      %p150 = scmp.eq.s32.totalorder %s28, 0
      %p151 = por %p149, %p150
      %s153 = sadd.s32 %s152, 1
      %p156 = scmp.eq.s32.totalorder %s22, 1
      %p157 = scmp.ne.s32.totalorder %s152, %s154
      %p158 = scmp.eq.s32.totalorder %s22, 0
      %p159 = por %p157, %p158
      %p160 = scmp.ne.s32.totalorder %s152, %s154
      %p161 = scmp.eq.s32.totalorder %s27, 1
      %p162 = por %p160, %p161
      %p163 = scmp.ne.s32.totalorder %s154, %s155
      %p164 = scmp.eq.s32.totalorder %s27, 0
      %p165 = por %p163, %p164
      %p166 = scmp.ne.s32.totalorder %s154, %s155
      %p167 = scmp.eq.s32.totalorder %s28, 1
      %p168 = por %p166, %p167
      %p170 = scmp.ne.s32.totalorder %s155, %s169
      %p171 = scmp.eq.s32.totalorder %s28, 0
      %p172 = por %p170, %p171
      %s174 = sadd.s32 %s173, 1
      %p177 = scmp.eq.s32.totalorder %s22, 1
      %p178 = scmp.ne.s32.totalorder %s173, %s175
      %p179 = scmp.eq.s32.totalorder %s22, 0
      %p180 = por %p178, %p179
      %p181 = scmp.ne.s32.totalorder %s173, %s175
      %p182 = scmp.eq.s32.totalorder %s27, 1
      %p183 = por %p181, %p182
      %p184 = scmp.ne.s32.totalorder %s175, %s176
      %p185 = scmp.eq.s32.totalorder %s27, 0
      %p186 = por %p184, %p185
      %p187 = scmp.ne.s32.totalorder %s175, %s176
      %p188 = scmp.eq.s32.totalorder %s28, 1
      %p189 = por %p187, %p188
      %p191 = scmp.ne.s32.totalorder %s176, %s190
      %p192 = scmp.eq.s32.totalorder %s28, 0
      %p193 = por %p191, %p192
      %s195 = sadd.s32 %s194, 1
      %p198 = scmp.eq.s32.totalorder %s22, 1
      %p199 = scmp.ne.s32.totalorder %s194, %s196
      %p200 = scmp.eq.s32.totalorder %s22, 0
      %p201 = por %p199, %p200
      %p202 = scmp.ne.s32.totalorder %s194, %s196
      %p203 = scmp.eq.s32.totalorder %s27, 1
      %p204 = por %p202, %p203
      %p205 = scmp.ne.s32.totalorder %s196, %s197
      %p206 = scmp.eq.s32.totalorder %s27, 0
      %p207 = por %p205, %p206
      %p208 = scmp.ne.s32.totalorder %s196, %s197
      %p209 = scmp.eq.s32.totalorder %s28, 1
      %p210 = por %p208, %p209
      %p212 = scmp.ne.s32.totalorder %s197, %s211
      %p213 = scmp.eq.s32.totalorder %s28, 0
      %p214 = por %p212, %p213
      %s215 = ssub.s32 %s29, %s41
      %p216 = scmp.eq.s32.totalorder %s215, 0
      %s218 = sadd.s32 %s217, 1
      %s219 = scalar_select %p216, %s217, %s218
      %p222 = pneg %p216
      %p223 = scmp.eq.s32.totalorder %s22, 1
      %p224 = por %p222, %p223
      %p225 = scmp.ne.s32.totalorder %s217, %s220
      %p226 = scmp.eq.s32.totalorder %s22, 0
      %p227 = por %p225, %p226
      %p228 = scmp.ne.s32.totalorder %s217, %s220
      %p229 = scmp.eq.s32.totalorder %s27, 1
      %p230 = por %p228, %p229
      %p231 = scmp.ne.s32.totalorder %s220, %s221
      %p232 = scmp.eq.s32.totalorder %s27, 0
      %p233 = por %p231, %p232
      %p234 = scmp.ne.s32.totalorder %s220, %s221
      %p235 = scmp.eq.s32.totalorder %s28, 1
      %p236 = por %p234, %p235
      %p238 = scmp.ne.s32.totalorder %s221, %s237
      %p239 = scmp.eq.s32.totalorder %s28, 0
      %p240 = por %p238, %p239
      %p241 = scmp.le.s32.totalorder 1, %s22
      %p242 = scmp.lt.s32.totalorder %s22, 3
      %p243 = pnand %p241, %p242
      %p244 = pneg %p243
      // Predicated region
      $region9: #{tpu_custom_call.1} parent=5 // pred_check
        _
      $region10: #{tpu_custom_call.1} parent=5 // pred_check_branch
        %246 = sbr.rel (%p243) target = $region12
      $region11: #{tpu_custom_call.1} parent=5 // pred_region
        %s247 = ssub.s32 %s22, 1
        // Predicated region
        $region13: #{tpu_custom_call.1} parent=11 // pred_check
          %p248 = pneg %p81
        $region14: #{tpu_custom_call.1} parent=11 // pred_check_branch
          %250 = sbr.rel (%p248) target = $region16
        $region15: #{tpu_custom_call.1} parent=11 // pred_region
          _
        $region16: #{tpu_custom_call.1} parent=11 // pred_fallthru
          _
        // Predicated region
        $region17: #{tpu_custom_call.1} parent=11 // pred_check
          %p251 = pneg %p102
        $region18: #{tpu_custom_call.1} parent=11 // pred_check_branch
          %253 = sbr.rel (%p251) target = $region20
        $region19: #{tpu_custom_call.1} parent=11 // pred_region
          _
        $region20: #{tpu_custom_call.1} parent=11 // pred_fallthru
          _
        // Predicated region
        $region21: #{tpu_custom_call.1} parent=11 // pred_check
          %p254 = pneg %p123
        $region22: #{tpu_custom_call.1} parent=11 // pred_check_branch
          %256 = sbr.rel (%p254) target = $region24
        $region23: #{tpu_custom_call.1} parent=11 // pred_region
          %s258 = ssub.s32 512, 512
          %259 = vsyncadd [#allocation9], %s258
          %s260 = sshll.u32 [#allocation8], 4
          %s261 = int_to_ptr.vmem [resolvable:$true] %s260
          %266 = dma.hbm_to_vmem [thread:$0]  %s3, 512, %s261, [#allocation9], 64, 64, 4
        $region24: #{tpu_custom_call.1} parent=11 // pred_fallthru
          _
        // Predicated region
        $region25: #{tpu_custom_call.1} parent=11 // pred_check
          %p267 = pneg %p144
        $region26: #{tpu_custom_call.1} parent=11 // pred_check_branch
          %269 = sbr.rel (%p267) target = $region28
        $region27: #{tpu_custom_call.1} parent=11 // pred_region
          %s271 = ssub.s32 512, 512
          %272 = vsyncadd [#allocation9], %s271
          %s273 = sshll.u32 [#allocation10], 4
          %s274 = int_to_ptr.vmem [resolvable:$true] %s273
          %279 = dma.hbm_to_vmem [thread:$0]  %s4, 512, %s274, [#allocation9], 64, 64, 4
        $region28: #{tpu_custom_call.1} parent=11 // pred_fallthru
          _
        // Predicated region
        $region29: #{tpu_custom_call.1} parent=11 // pred_check
          %p280 = pneg %p165
        $region30: #{tpu_custom_call.1} parent=11 // pred_check_branch
          %282 = sbr.rel (%p280) target = $region32
        $region31: #{tpu_custom_call.1} parent=11 // pred_region
          %s284 = ssub.s32 512, 512
          %285 = vsyncadd [#allocation12], %s284
          %s286 = sshll.u32 [#allocation11], 4
          %s287 = int_to_ptr.vmem [resolvable:$true] %s286
          %292 = dma.hbm_to_vmem [thread:$0]  %s5, 512, %s287, [#allocation12], 64, 64, 4
        $region32: #{tpu_custom_call.1} parent=11 // pred_fallthru
          _
        // Predicated region
        $region33: #{tpu_custom_call.1} parent=11 // pred_check
          %p293 = pneg %p186
        $region34: #{tpu_custom_call.1} parent=11 // pred_check_branch
          %295 = sbr.rel (%p293) target = $region36
        $region35: #{tpu_custom_call.1} parent=11 // pred_region
          %s297 = ssub.s32 512, 512
          %298 = vsyncadd [#allocation12], %s297
          %s299 = sshll.u32 [#allocation13], 4
          %s300 = int_to_ptr.vmem [resolvable:$true] %s299
          %305 = dma.hbm_to_vmem [thread:$0]  %s6, 512, %s300, [#allocation12], 64, 64, 4
        $region36: #{tpu_custom_call.1} parent=11 // pred_fallthru
          _
        // Predicated region
        $region37: #{tpu_custom_call.1} parent=11 // pred_check
          %p306 = pneg %p207
        $region38: #{tpu_custom_call.1} parent=11 // pred_check_branch
          %308 = sbr.rel (%p306) target = $region40
        $region39: #{tpu_custom_call.1} parent=11 // pred_region
          _
        $region40: #{tpu_custom_call.1} parent=11 // pred_fallthru
          _
      $region12: #{tpu_custom_call.1} parent=5 // pred_fallthru
        _
      %p309 = scmp.lt.s32.totalorder %s22, 2
      // Predicated region
      $region41: #{tpu_custom_call.1} parent=5 // pred_check
        %p310 = pneg %p309
      $region42: #{tpu_custom_call.1} parent=5 // pred_check_branch
        %312 = sbr.rel (%p310) target = $region44
      $region43: #{tpu_custom_call.1} parent=5 // pred_region
        // Predicated region
        $region45: #{tpu_custom_call.1} parent=43 // pred_check
          %p313 = pneg %p54
        $region46: #{tpu_custom_call.1} parent=43 // pred_check_branch
          %315 = sbr.rel (%p313) target = $region48
        $region47: #{tpu_custom_call.1} parent=43 // pred_region
          %s316 = sand.u32 %s44, 1
          %s317 = scalar_lea.sflag [#allocation6], %s316
          %s318 = sand.u32 %s44, 1
          %s319 = smul.addr %s318, 64
          %s320 = scalar_lea.vmem [#allocation5], %s319
          %s322 = ssub.s32 1024, 1024
          %323 = vsyncadd %s317, %s322
          %s324 = smul.addr %s29, 8
          %s325 = smul.addr %s324, 128
          %s326 = scalar_lea.hbm %s0, %s325
          %s327 = sshll.u32 %s320, 4
          %s328 = int_to_ptr.vmem [resolvable:$true] %s327
          %333 = dma.hbm_to_vmem [thread:$0]  %s326, 1024, %s328, %s317, 128, 128, 8
        $region48: #{tpu_custom_call.1} parent=43 // pred_fallthru
          _
      $region44: #{tpu_custom_call.1} parent=5 // pred_fallthru
        _
      %p334 = scmp.le.s32.totalorder 1, %s22
      %p335 = scmp.lt.s32.totalorder %s22, 3
      %p336 = pnand %p334, %p335
      %p337 = pneg %p336
      // Predicated region
      $region49: #{tpu_custom_call.1} parent=5 // pred_check
        _
      $region50: #{tpu_custom_call.1} parent=5 // pred_check_branch
        %339 = sbr.rel (%p336) target = $region52
      $region51: #{tpu_custom_call.1} parent=5 // pred_region
        %s340 = ssub.s32 %s22, 1
        %s341 = sand.u32 %s47, 1
        %s342 = scalar_lea.sflag [#allocation6], %s341
        %s343 = sand.u32 %s47, 1
        %s344 = smul.addr %s343, 64
        %s345 = scalar_lea.vmem [#allocation5], %s344
        // Predicated region
        $region53: #{tpu_custom_call.1} parent=51 // pred_check
          %p346 = pneg %p60
        $region54: #{tpu_custom_call.1} parent=51 // pred_check_branch
          %348 = sbr.rel (%p346) target = $region56
        $region55: #{tpu_custom_call.1} parent=51 // pred_region
          %349 = dma.done %s342, 1024
        $region56: #{tpu_custom_call.1} parent=51 // pred_fallthru
          _
        // Predicated region
        $region57: #{tpu_custom_call.1} parent=51 // pred_check
          %p350 = pneg %p123
        $region58: #{tpu_custom_call.1} parent=51 // pred_check_branch
          %352 = sbr.rel (%p350) target = $region60
        $region59: #{tpu_custom_call.1} parent=51 // pred_region
          %353 = dma.done [#allocation9], 512
        $region60: #{tpu_custom_call.1} parent=51 // pred_fallthru
          _
        // Predicated region
        $region61: #{tpu_custom_call.1} parent=51 // pred_check
          %p354 = pneg %p144
        $region62: #{tpu_custom_call.1} parent=51 // pred_check_branch
          %356 = sbr.rel (%p354) target = $region64
        $region63: #{tpu_custom_call.1} parent=51 // pred_region
          %357 = dma.done [#allocation9], 512
        $region64: #{tpu_custom_call.1} parent=51 // pred_fallthru
          _
        // Predicated region
        $region65: #{tpu_custom_call.1} parent=51 // pred_check
          %p358 = pneg %p165
        $region66: #{tpu_custom_call.1} parent=51 // pred_check_branch
          %360 = sbr.rel (%p358) target = $region68
        $region67: #{tpu_custom_call.1} parent=51 // pred_region
          %361 = dma.done [#allocation12], 512
        $region68: #{tpu_custom_call.1} parent=51 // pred_fallthru
          _
        // Predicated region
        $region69: #{tpu_custom_call.1} parent=51 // pred_check
          %p362 = pneg %p186
        $region70: #{tpu_custom_call.1} parent=51 // pred_check_branch
          %364 = sbr.rel (%p362) target = $region72
        $region71: #{tpu_custom_call.1} parent=51 // pred_region
          %365 = dma.done [#allocation12], 512
        $region72: #{tpu_custom_call.1} parent=51 // pred_fallthru
          _
        %s366 = sand.u32 %s47, 1
        %s367 = scalar_lea.sflag [#allocation6], %s366
        %s368 = sand.u32 %s47, 1
        %s369 = smul.addr %s368, 64
        %s370 = scalar_lea.vmem [#allocation5], %s369
        %p371 = pneg %p60
        %p372 = pneg %p57
        %p373 = pneg %p81
        %p374 = pneg %p78
        %p375 = pneg %p102
        %p376 = pneg %p99
        %p377 = pneg %p123
        %p378 = pneg %p120
        %p379 = pneg %p144
        %p380 = pneg %p141
        %p381 = pneg %p165
        %p382 = pneg %p162
        %p383 = pneg %p186
        %p384 = pneg %p183
        %p385 = pneg %p207
        %p386 = pneg %p204
        %p387 = pneg %p233
        %p388 = pneg %p230
        %s389 = sand.u32 %s220, 1
        %s390 = scalar_lea.sflag [#allocation7], %s389
        %s391 = sand.u32 %s220, 1
        %s392 = smul.addr %s391, 64
        %s393 = scalar_lea.vmem [#allocation14], %s392
        %p395 = scmp.eq.s32.totalorder %s32, 0
        // Predicated region
        $region73: #{tpu_custom_call.1} parent=51 // pred_check
          %p396 = pneg %p395
        $region74: #{tpu_custom_call.1} parent=51 // pred_check_branch
          %398 = sbr.rel (%p396) target = $region76
        $region75: #{tpu_custom_call.1} parent=51 // pred_region
          %v399 = vld [vmem:[%s345] sm:$0xff]
          %v400 = vld [vmem:[%s345 + $0x8] sm:$0xff]
          %v401 = vld [vmem:[%s345 + $0x10] sm:$0xff]
          %v402 = vld [vmem:[%s345 + $0x18] sm:$0xff]
          %v403 = vld [vmem:[%s345 + $0x20] sm:$0xff]
          %v404 = vld [vmem:[%s345 + $0x28] sm:$0xff]
          %v405 = vld [vmem:[%s345 + $0x30] sm:$0xff]
          %v406 = vld [vmem:[%s345 + $0x38] sm:$0xff]
          %v407 = vld [vmem:[%s1] sm:$0x1]
          %v408 = vld [vmem:[%s2] sm:$0x1]
          %vm409 = vcmask 523264
          %v410 = vsel %vm409, %v399, 0.0
          %411 = vadd.xlane.f32.xlu0 %v410
          %v412 = vpop.xlane.xlu0 %411
          %v413 = vsel %vm409, %v400, 0.0
          %414 = vadd.xlane.f32.xlu0 %v413
          %v415 = vpop.xlane.xlu0 %414
          %v416 = vsel %vm409, %v401, 0.0
          %417 = vadd.xlane.f32.xlu0 %v416
          %v418 = vpop.xlane.xlu0 %417
          %v419 = vsel %vm409, %v402, 0.0
          %420 = vadd.xlane.f32.xlu0 %v419
          %v421 = vpop.xlane.xlu0 %420
          %v422 = vsel %vm409, %v403, 0.0
          %423 = vadd.xlane.f32.xlu0 %v422
          %v424 = vpop.xlane.xlu0 %423
          %v425 = vsel %vm409, %v404, 0.0
          %426 = vadd.xlane.f32.xlu0 %v425
          %v427 = vpop.xlane.xlu0 %426
          %v428 = vsel %vm409, %v405, 0.0
          %429 = vadd.xlane.f32.xlu0 %v428
          %v430 = vpop.xlane.xlu0 %429
          %v431 = vsel %vm409, %v406, 0.0
          %432 = vadd.xlane.f32.xlu0 %v431
          %v433 = vpop.xlane.xlu0 %432
          %v434 = vrcp.pop 64.0
          %v435 = vmul.f32 %v412, %v434
          %v436 = vmul.f32 %v415, %v434
          %v437 = vmul.f32 %v418, %v434
          %v438 = vmul.f32 %v421, %v434
          %v439 = vmul.f32 %v424, %v434
          %v440 = vmul.f32 %v427, %v434
          %v441 = vmul.f32 %v430, %v434
          %v442 = vmul.f32 %v433, %v434
          %v443 = vsub.f32 %v399, %v435
          %v444 = vsub.f32 %v400, %v436
          %v445 = vsub.f32 %v401, %v437
          %v446 = vsub.f32 %v402, %v438
          %v447 = vsub.f32 %v403, %v439
          %v448 = vsub.f32 %v404, %v440
          %v449 = vsub.f32 %v405, %v441
          %v450 = vsub.f32 %v406, %v442
          %v451 = vmul.f32 %v443, %v443
          %v452 = vmul.f32 %v444, %v444
          %v453 = vmul.f32 %v445, %v445
          %v454 = vmul.f32 %v446, %v446
          %v455 = vmul.f32 %v447, %v447
          %v456 = vmul.f32 %v448, %v448
          %v457 = vmul.f32 %v449, %v449
          %v458 = vmul.f32 %v450, %v450
          %v459 = vsel %vm409, %v451, 0.0
          %460 = vadd.xlane.f32.xlu0 %v459
          %v461 = vpop.xlane.xlu0 %460
          %v462 = vsel %vm409, %v452, 0.0
          %463 = vadd.xlane.f32.xlu0 %v462
          %v464 = vpop.xlane.xlu0 %463
          %v465 = vsel %vm409, %v453, 0.0
          %466 = vadd.xlane.f32.xlu0 %v465
          %v467 = vpop.xlane.xlu0 %466
          %v468 = vsel %vm409, %v454, 0.0
          %469 = vadd.xlane.f32.xlu0 %v468
          %v470 = vpop.xlane.xlu0 %469
          %v471 = vsel %vm409, %v455, 0.0
          %472 = vadd.xlane.f32.xlu0 %v471
          %v473 = vpop.xlane.xlu0 %472
          %v474 = vsel %vm409, %v456, 0.0
          %475 = vadd.xlane.f32.xlu0 %v474
          %v476 = vpop.xlane.xlu0 %475
          %v477 = vsel %vm409, %v457, 0.0
          %478 = vadd.xlane.f32.xlu0 %v477
          %v479 = vpop.xlane.xlu0 %478
          %v480 = vsel %vm409, %v458, 0.0
          %481 = vadd.xlane.f32.xlu0 %v480
          %v482 = vpop.xlane.xlu0 %481
          %v483 = vmul.f32 %v461, %v434
          %v484 = vmul.f32 %v464, %v434
          %v485 = vmul.f32 %v467, %v434
          %v486 = vmul.f32 %v470, %v434
          %v487 = vmul.f32 %v473, %v434
          %v488 = vmul.f32 %v476, %v434
          %v489 = vmul.f32 %v479, %v434
          %v490 = vmul.f32 %v482, %v434
          %v491 = vadd.f32 %v483, 1e-05
          %v492 = vadd.f32 %v484, 1e-05
          %v493 = vadd.f32 %v485, 1e-05
          %v494 = vadd.f32 %v486, 1e-05
          %v495 = vadd.f32 %v487, 1e-05
          %v496 = vadd.f32 %v488, 1e-05
          %v497 = vadd.f32 %v489, 1e-05
          %v498 = vadd.f32 %v490, 1e-05
          %v499 = vrsqrt.pop %v491
          %v500 = vrsqrt.pop %v492
          %v501 = vrsqrt.pop %v493
          %v502 = vrsqrt.pop %v494
          %v503 = vrsqrt.pop %v495
          %v504 = vrsqrt.pop %v496
          %v505 = vrsqrt.pop %v497
          %v506 = vrsqrt.pop %v498
          %v507 = vmul.f32 %v443, %v499
          %v508 = vmul.f32 %v444, %v500
          %v509 = vmul.f32 %v445, %v501
          %v510 = vmul.f32 %v446, %v502
          %v511 = vmul.f32 %v447, %v503
          %v512 = vmul.f32 %v448, %v504
          %v513 = vmul.f32 %v449, %v505
          %v514 = vmul.f32 %v450, %v506
          %v516 = vlaneseq
          %v517 = vshrl.u32 %v516, 7
          %v518 = vsub.s32 0, %v517
          %v519 = vrot.slane %v407, %v518
          %v521 = vmul.f32 %v507, %v519
          %v522 = vmul.f32 %v508, %v519
          %v523 = vmul.f32 %v509, %v519
          %v524 = vmul.f32 %v510, %v519
          %v525 = vmul.f32 %v511, %v519
          %v526 = vmul.f32 %v512, %v519
          %v527 = vmul.f32 %v513, %v519
          %v528 = vmul.f32 %v514, %v519
          %v530 = vlaneseq
          %v531 = vshrl.u32 %v530, 7
          %v532 = vsub.s32 0, %v531
          %v533 = vrot.slane %v408, %v532
          %v535 = vadd.f32 %v521, %v533
          %v536 = vadd.f32 %v522, %v533
          %v537 = vadd.f32 %v523, %v533
          %v538 = vadd.f32 %v524, %v533
          %v539 = vadd.f32 %v525, %v533
          %v540 = vadd.f32 %v526, %v533
          %v541 = vadd.f32 %v527, %v533
          %v542 = vadd.f32 %v528, %v533
          %v543 = vpack.c.bf16 %v536, %v535
          %v544 = vpack.c.bf16 %v538, %v537
          %v545 = vpack.c.bf16 %v540, %v539
          %v546 = vpack.c.bf16 %v542, %v541
          %547 = vst.msk [vmem:[#allocation2] sm:$0xff] %vm409, %v543
          %548 = vst.msk [vmem:[#allocation2 + $0x8] sm:$0xff] %vm409, %v544
          %549 = vst.msk [vmem:[#allocation2 + $0x10] sm:$0xff] %vm409, %v545
          %550 = vst.msk [vmem:[#allocation2 + $0x18] sm:$0xff] %vm409, %v546
          %551 = vst.msk [vmem:[#allocation4] sm:$0xff] %vm409, 0.0
          %552 = vst.msk [vmem:[#allocation4 + $0x8] sm:$0xff] %vm409, 0.0
          %553 = vst.msk [vmem:[#allocation4 + $0x10] sm:$0xff] %vm409, 0.0
          %554 = vst.msk [vmem:[#allocation4 + $0x18] sm:$0xff] %vm409, 0.0
          %555 = vst.msk [vmem:[#allocation4 + $0x20] sm:$0xff] %vm409, 0.0
          %556 = vst.msk [vmem:[#allocation4 + $0x28] sm:$0xff] %vm409, 0.0
          %557 = vst.msk [vmem:[#allocation4 + $0x30] sm:$0xff] %vm409, 0.0
          %558 = vst.msk [vmem:[#allocation4 + $0x38] sm:$0xff] %vm409, 0.0
        $region76: #{tpu_custom_call.1} parent=51 // pred_fallthru
          _
        %v559 = vld [vmem:[#allocation2] sm:$0xff]
        %v560 = vld [vmem:[#allocation2 + $0x8] sm:$0xff]
        %v561 = vld [vmem:[#allocation2 + $0x10] sm:$0xff]
        %v562 = vld [vmem:[#allocation2 + $0x18] sm:$0xff]
        %s563 = smul.u32 %s32, 8
        %s564 = smul.addr %s563, 4
        %s565 = scalar_lea.vmem [#allocation8], %s564
        %v566 = vld [vmem:[%s565] sm:$0xf]
        %v567 = vld [vmem:[%s565 + $0x4] sm:$0xf]
        %v568 = vld [vmem:[%s565 + $0x8] sm:$0xf]
        %v569 = vld [vmem:[%s565 + $0xc] sm:$0xf]
        %v570 = vld [vmem:[%s565 + $0x10] sm:$0xf]
        %v571 = vld [vmem:[%s565 + $0x14] sm:$0xf]
        %v572 = vld [vmem:[%s565 + $0x18] sm:$0xf]
        %v573 = vld [vmem:[%s565 + $0x1c] sm:$0xf]
        %v582 = vunpack.c.l.b16 %v566
        %v583 = vunpack.c.l.b16 %v567
        %v584 = vunpack.c.l.b16 %v568
        %v585 = vunpack.c.l.b16 %v569
        %v586 = vunpack.c.l.b16 %v570
        %v587 = vunpack.c.l.b16 %v571
        %v588 = vunpack.c.l.b16 %v572
        %v589 = vunpack.c.l.b16 %v573
        %v590 = vpack.c.b16 %v583, %v582
        %v591 = vpack.c.b16 %v585, %v584
        %v592 = vpack.c.b16 %v587, %v586
        %v593 = vpack.c.b16 %v589, %v588
        %vm598 = vcmask 523264
        %v600 = vsel %vm598, %v559, 0
        %v603 = vsel %vm598, %v560, 0
        %v606 = vsel %vm598, %v561, 0
        %v609 = vsel %vm598, %v562, 0
        %611 = vmatprep.subr.bf16.mxu0 0
        %612 = vmatpush1.bf16.msra.mxu0 %v590
        %613 = vmatprep.subr.bf16.mxu0 0
        %614 = vmatpush1.bf16.msra.mxu0 %v591
        %615 = vmatprep.subr.bf16.mxu0 0
        %616 = vmatpush1.bf16.msra.mxu0 %v592
        %617 = vmatprep.subr.bf16.mxu0 0
        %618 = vmatpush1.bf16.msra.mxu0 %v593
        %619 = vmatprep.subr.bf16.mxu0 0
        %620 = vmatpush1.bf16.msra.mxu0 0
        %621 = vmatprep.subr.bf16.mxu0 0
        %622 = vmatpush1.bf16.msra.mxu0 0
        %623 = vmatprep.subr.bf16.mxu0 0
        %624 = vmatpush1.bf16.msra.mxu0 0
        %625 = vmatprep.subr.bf16.mxu0 0
        %626 = vmatpush1.bf16.msra.mxu0 0
        %627 = vmatprep.subr.bf16.mxu0 0
        %628 = vmatpush1.bf16.msra.mxu0 0
        %629 = vmatprep.subr.bf16.mxu0 0
        %630 = vmatpush1.bf16.msra.mxu0 0
        %631 = vmatprep.subr.bf16.mxu0 0
        %632 = vmatpush1.bf16.msra.mxu0 0
        %633 = vmatprep.subr.bf16.mxu0 0
        %634 = vmatpush1.bf16.msra.mxu0 0
        %635 = vmatprep.subr.bf16.mxu0 0
        %636 = vmatpush1.bf16.msra.mxu0 0
        %637 = vmatprep.subr.bf16.mxu0 0
        %638 = vmatpush1.bf16.msra.mxu0 0
        %639 = vmatprep.subr.bf16.mxu0 0
        %640 = vmatpush1.bf16.msra.mxu0 0
        %641 = vmatprep.subr.bf16.mxu0 0
        %642 = vmatpush1.bf16.msra.mxu0 0
        %643 = vmatprep.mubr.bf16.mxu0 0
        %644 = vmatmul.mubr.bf16.gmra.mrb[0].mxu0 %v600
        %v645 = vpop.f32.mrb[0].mxu0
        %v646 = vadd.f32 0.0, %v645
        %v647 = vpop.f32.mrb[0].mxu0
        %v648 = vpop.f32.mrb[0].mxu0
        %v649 = vadd.f32 0.0, %v648
        %v650 = vpop.f32.mrb[0].mxu0
        %651 = vmatprep.mubr.bf16.mxu0 0
        %652 = vmatmul.mubr.bf16.gmra.mrb[0].mxu0 %v603
        %v653 = vpop.f32.mrb[0].mxu0
        %v654 = vadd.f32 0.0, %v653
        %v655 = vpop.f32.mrb[0].mxu0
        %v656 = vpop.f32.mrb[0].mxu0
        %v657 = vadd.f32 0.0, %v656
        %v658 = vpop.f32.mrb[0].mxu0
        %659 = vmatprep.mubr.bf16.mxu0 0
        %660 = vmatmul.mubr.bf16.gmra.mrb[0].mxu0 %v606
        %v661 = vpop.f32.mrb[0].mxu0
        %v662 = vadd.f32 0.0, %v661
        %v663 = vpop.f32.mrb[0].mxu0
        %v664 = vpop.f32.mrb[0].mxu0
        %v665 = vadd.f32 0.0, %v664
        %v666 = vpop.f32.mrb[0].mxu0
        %667 = vmatprep.mubr.bf16.mxu0 0
        %668 = vmatmul.mubr.bf16.gmra.mrb[0].mxu0 %v609
        %v669 = vpop.f32.mrb[0].mxu0
        %v670 = vadd.f32 0.0, %v669
        %v671 = vpop.f32.mrb[0].mxu0
        %v672 = vpop.f32.mrb[0].mxu0
        %v673 = vadd.f32 0.0, %v672
        %v674 = vpop.f32.mrb[0].mxu0
        %675 = vdwg.mxu0
        %v676 = vpack.c.bf16 %v649, %v646
        %v677 = vpack.c.bf16 %v657, %v654
        %v678 = vpack.c.bf16 %v665, %v662
        %v679 = vpack.c.bf16 %v673, %v670
        %s680 = smul.addr %s563, 4
        %s681 = scalar_lea.vmem [#allocation10], %s680
        %v682 = vld [vmem:[%s681] sm:$0xf]
        %v683 = vld [vmem:[%s681 + $0x4] sm:$0xf]
        %v684 = vld [vmem:[%s681 + $0x8] sm:$0xf]
        %v685 = vld [vmem:[%s681 + $0xc] sm:$0xf]
        %v686 = vld [vmem:[%s681 + $0x10] sm:$0xf]
        %v687 = vld [vmem:[%s681 + $0x14] sm:$0xf]
        %v688 = vld [vmem:[%s681 + $0x18] sm:$0xf]
        %v689 = vld [vmem:[%s681 + $0x1c] sm:$0xf]
        %v698 = vunpack.c.l.b16 %v682
        %v699 = vunpack.c.l.b16 %v683
        %v700 = vunpack.c.l.b16 %v684
        %v701 = vunpack.c.l.b16 %v685
        %v702 = vunpack.c.l.b16 %v686
        %v703 = vunpack.c.l.b16 %v687
        %v704 = vunpack.c.l.b16 %v688
        %v705 = vunpack.c.l.b16 %v689
        %v706 = vpack.c.b16 %v699, %v698
        %v707 = vpack.c.b16 %v701, %v700
        %v708 = vpack.c.b16 %v703, %v702
        %v709 = vpack.c.b16 %v705, %v704
        %714 = vmatprep.subr.bf16.mxu0 0
        %715 = vmatpush1.bf16.msra.mxu0 %v706
        %716 = vmatprep.subr.bf16.mxu0 0
        %717 = vmatpush1.bf16.msra.mxu0 %v707
        %718 = vmatprep.subr.bf16.mxu0 0
        %719 = vmatpush1.bf16.msra.mxu0 %v708
        %720 = vmatprep.subr.bf16.mxu0 0
        %721 = vmatpush1.bf16.msra.mxu0 %v709
        %722 = vmatprep.subr.bf16.mxu0 0
        %723 = vmatpush1.bf16.msra.mxu0 0
        %724 = vmatprep.subr.bf16.mxu0 0
        %725 = vmatpush1.bf16.msra.mxu0 0
        %726 = vmatprep.subr.bf16.mxu0 0
        %727 = vmatpush1.bf16.msra.mxu0 0
        %728 = vmatprep.subr.bf16.mxu0 0
        %729 = vmatpush1.bf16.msra.mxu0 0
        %730 = vmatprep.subr.bf16.mxu0 0
        %731 = vmatpush1.bf16.msra.mxu0 0
        %732 = vmatprep.subr.bf16.mxu0 0
        %733 = vmatpush1.bf16.msra.mxu0 0
        %734 = vmatprep.subr.bf16.mxu0 0
        %735 = vmatpush1.bf16.msra.mxu0 0
        %736 = vmatprep.subr.bf16.mxu0 0
        %737 = vmatpush1.bf16.msra.mxu0 0
        %738 = vmatprep.subr.bf16.mxu0 0
        %739 = vmatpush1.bf16.msra.mxu0 0
        %740 = vmatprep.subr.bf16.mxu0 0
        %741 = vmatpush1.bf16.msra.mxu0 0
        %742 = vmatprep.subr.bf16.mxu0 0
        %743 = vmatpush1.bf16.msra.mxu0 0
        %744 = vmatprep.subr.bf16.mxu0 0
        %745 = vmatpush1.bf16.msra.mxu0 0
        %746 = vmatprep.mubr.bf16.mxu0 0
        %747 = vmatmul.mubr.bf16.gmra.mrb[0].mxu0 %v600
        %v748 = vpop.f32.mrb[0].mxu0
        %v749 = vadd.f32 0.0, %v748
        %v750 = vpop.f32.mrb[0].mxu0
        %v751 = vpop.f32.mrb[0].mxu0
        %v752 = vadd.f32 0.0, %v751
        %v753 = vpop.f32.mrb[0].mxu0
        %754 = vmatprep.mubr.bf16.mxu0 0
        %755 = vmatmul.mubr.bf16.gmra.mrb[0].mxu0 %v603
        %v756 = vpop.f32.mrb[0].mxu0
        %v757 = vadd.f32 0.0, %v756
        %v758 = vpop.f32.mrb[0].mxu0
        %v759 = vpop.f32.mrb[0].mxu0
        %v760 = vadd.f32 0.0, %v759
        %v761 = vpop.f32.mrb[0].mxu0
        %762 = vmatprep.mubr.bf16.mxu0 0
        %763 = vmatmul.mubr.bf16.gmra.mrb[0].mxu0 %v606
        %v764 = vpop.f32.mrb[0].mxu0
        %v765 = vadd.f32 0.0, %v764
        %v766 = vpop.f32.mrb[0].mxu0
        %v767 = vpop.f32.mrb[0].mxu0
        %v768 = vadd.f32 0.0, %v767
        %v769 = vpop.f32.mrb[0].mxu0
        %770 = vmatprep.mubr.bf16.mxu0 0
        %771 = vmatmul.mubr.bf16.gmra.mrb[0].mxu0 %v609
        %v772 = vpop.f32.mrb[0].mxu0
        %v773 = vadd.f32 0.0, %v772
        %v774 = vpop.f32.mrb[0].mxu0
        %v775 = vpop.f32.mrb[0].mxu0
        %v776 = vadd.f32 0.0, %v775
        %v777 = vpop.f32.mrb[0].mxu0
        %778 = vdwg.mxu0
        %v779 = vpack.c.bf16 %v752, %v749
        %v780 = vpack.c.bf16 %v760, %v757
        %v781 = vpack.c.bf16 %v768, %v765
        %v782 = vpack.c.bf16 %v776, %v773
        %s783 = smul.addr %s563, 4
        %s784 = scalar_lea.vmem [#allocation11], %s783
        %v785 = vld [vmem:[%s784] sm:$0xf]
        %v786 = vld [vmem:[%s784 + $0x4] sm:$0xf]
        %v787 = vld [vmem:[%s784 + $0x8] sm:$0xf]
        %v788 = vld [vmem:[%s784 + $0xc] sm:$0xf]
        %v789 = vld [vmem:[%s784 + $0x10] sm:$0xf]
        %v790 = vld [vmem:[%s784 + $0x14] sm:$0xf]
        %v791 = vld [vmem:[%s784 + $0x18] sm:$0xf]
        %v792 = vld [vmem:[%s784 + $0x1c] sm:$0xf]
        %v801 = vunpack.c.l.b16 %v785
        %v802 = vunpack.c.l.b16 %v786
        %v803 = vunpack.c.l.b16 %v787
        %v804 = vunpack.c.l.b16 %v788
        %v805 = vunpack.c.l.b16 %v789
        %v806 = vunpack.c.l.b16 %v790
        %v807 = vunpack.c.l.b16 %v791
        %v808 = vunpack.c.l.b16 %v792
        %v809 = vpack.c.b16 %v802, %v801
        %v810 = vpack.c.b16 %v804, %v803
        %v811 = vpack.c.b16 %v806, %v805
        %v812 = vpack.c.b16 %v808, %v807
        %817 = vmatprep.subr.bf16.mxu0 0
        %818 = vmatpush1.bf16.msra.mxu0 %v809
        %819 = vmatprep.subr.bf16.mxu0 0
        %820 = vmatpush1.bf16.msra.mxu0 %v810
        %821 = vmatprep.subr.bf16.mxu0 0
        %822 = vmatpush1.bf16.msra.mxu0 %v811
        %823 = vmatprep.subr.bf16.mxu0 0
        %824 = vmatpush1.bf16.msra.mxu0 %v812
        %825 = vmatprep.subr.bf16.mxu0 0
        %826 = vmatpush1.bf16.msra.mxu0 0
        %827 = vmatprep.subr.bf16.mxu0 0
        %828 = vmatpush1.bf16.msra.mxu0 0
        %829 = vmatprep.subr.bf16.mxu0 0
        %830 = vmatpush1.bf16.msra.mxu0 0
        %831 = vmatprep.subr.bf16.mxu0 0
        %832 = vmatpush1.bf16.msra.mxu0 0
        %833 = vmatprep.subr.bf16.mxu0 0
        %834 = vmatpush1.bf16.msra.mxu0 0
        %835 = vmatprep.subr.bf16.mxu0 0
        %836 = vmatpush1.bf16.msra.mxu0 0
        %837 = vmatprep.subr.bf16.mxu0 0
        %838 = vmatpush1.bf16.msra.mxu0 0
        %839 = vmatprep.subr.bf16.mxu0 0
        %840 = vmatpush1.bf16.msra.mxu0 0
        %841 = vmatprep.subr.bf16.mxu0 0
        %842 = vmatpush1.bf16.msra.mxu0 0
        %843 = vmatprep.subr.bf16.mxu0 0
        %844 = vmatpush1.bf16.msra.mxu0 0
        %845 = vmatprep.subr.bf16.mxu0 0
        %846 = vmatpush1.bf16.msra.mxu0 0
        %847 = vmatprep.subr.bf16.mxu0 0
        %848 = vmatpush1.bf16.msra.mxu0 0
        %849 = vmatprep.mubr.bf16.mxu0 0
        %850 = vmatmul.mubr.bf16.gmra.mrb[0].mxu0 %v600
        %v851 = vpop.f32.mrb[0].mxu0
        %v852 = vadd.f32 0.0, %v851
        %v853 = vpop.f32.mrb[0].mxu0
        %v854 = vpop.f32.mrb[0].mxu0
        %v855 = vadd.f32 0.0, %v854
        %v856 = vpop.f32.mrb[0].mxu0
        %857 = vmatprep.mubr.bf16.mxu0 0
        %858 = vmatmul.mubr.bf16.gmra.mrb[0].mxu0 %v603
        %v859 = vpop.f32.mrb[0].mxu0
        %v860 = vadd.f32 0.0, %v859
        %v861 = vpop.f32.mrb[0].mxu0
        %v862 = vpop.f32.mrb[0].mxu0
        %v863 = vadd.f32 0.0, %v862
        %v864 = vpop.f32.mrb[0].mxu0
        %865 = vmatprep.mubr.bf16.mxu0 0
        %866 = vmatmul.mubr.bf16.gmra.mrb[0].mxu0 %v606
        %v867 = vpop.f32.mrb[0].mxu0
        %v868 = vadd.f32 0.0, %v867
        %v869 = vpop.f32.mrb[0].mxu0
        %v870 = vpop.f32.mrb[0].mxu0
        %v871 = vadd.f32 0.0, %v870
        %v872 = vpop.f32.mrb[0].mxu0
        %873 = vmatprep.mubr.bf16.mxu0 0
        %874 = vmatmul.mubr.bf16.gmra.mrb[0].mxu0 %v609
        %v875 = vpop.f32.mrb[0].mxu0
        %v876 = vadd.f32 0.0, %v875
        %v877 = vpop.f32.mrb[0].mxu0
        %v878 = vpop.f32.mrb[0].mxu0
        %v879 = vadd.f32 0.0, %v878
        %v880 = vpop.f32.mrb[0].mxu0
        %881 = vdwg.mxu0
        %v882 = vpack.c.bf16 %v855, %v852
        %v883 = vpack.c.bf16 %v863, %v860
        %v884 = vpack.c.bf16 %v871, %v868
        %v885 = vpack.c.bf16 %v879, %v876
        %vm886 = vcmask 130048
        %v888 = vsel %vm886, %v676, 0
        %v891 = vsel %vm886, %v677, 0
        %v894 = vsel %vm886, %v678, 0
        %v897 = vsel %vm886, %v679, 0
        %v900 = vsel %vm886, %v779, 0
        %v903 = vsel %vm886, %v780, 0
        %v906 = vsel %vm886, %v781, 0
        %v909 = vsel %vm886, %v782, 0
        %911 = vmatprep.subr.bf16.mxu0 0
        %912 = vmatpush1.bf16.xpose.msra.mxu0 %v900
        %913 = vmatprep.subr.bf16.mxu0 0
        %914 = vmatpush1.bf16.xpose.msra.mxu0 %v903
        %915 = vmatprep.subr.bf16.mxu0 0
        %916 = vmatpush1.bf16.xpose.msra.mxu0 %v906
        %917 = vmatprep.subr.bf16.mxu0 0
        %918 = vmatpush1.bf16.xpose.msra.mxu0 %v909
        %919 = vmatprep.subr.bf16.mxu0 0
        %920 = vmatpush1.bf16.xpose.msra.mxu0 0
        %921 = vmatprep.subr.bf16.mxu0 0
        %922 = vmatpush1.bf16.xpose.msra.mxu0 0
        %923 = vmatprep.subr.bf16.mxu0 0
        %924 = vmatpush1.bf16.xpose.msra.mxu0 0
        %925 = vmatprep.subr.bf16.mxu0 0
        %926 = vmatpush1.bf16.xpose.msra.mxu0 0
        %927 = vmatprep.subr.bf16.mxu0 0
        %928 = vmatpush1.bf16.xpose.msra.mxu0 0
        %929 = vmatprep.subr.bf16.mxu0 0
        %930 = vmatpush1.bf16.xpose.msra.mxu0 0
        %931 = vmatprep.subr.bf16.mxu0 0
        %932 = vmatpush1.bf16.xpose.msra.mxu0 0
        %933 = vmatprep.subr.bf16.mxu0 0
        %934 = vmatpush1.bf16.xpose.msra.mxu0 0
        %935 = vmatprep.subr.bf16.mxu0 0
        %936 = vmatpush1.bf16.xpose.msra.mxu0 0
        %937 = vmatprep.subr.bf16.mxu0 0
        %938 = vmatpush1.bf16.xpose.msra.mxu0 0
        %939 = vmatprep.subr.bf16.mxu0 0
        %940 = vmatpush1.bf16.xpose.msra.mxu0 0
        %941 = vmatprep.subr.bf16.mxu0 0
        %942 = vmatpush1.bf16.xpose.msra.mxu0 0
        %943 = vmatprep.mubr.bf16.mxu0 0
        %944 = vmatmul.mubr.bf16.gmra.mrb[0].mxu0 %v888
        %v945 = vpop.f32.mrb[0].mxu0
        %v946 = vadd.f32 0.0, %v945
        %v947 = vpop.f32.mrb[0].mxu0
        %v948 = vpop.f32.mrb[0].mxu0
        %v949 = vadd.f32 0.0, %v948
        %v950 = vpop.f32.mrb[0].mxu0
        %951 = vmatprep.mubr.bf16.mxu0 0
        %952 = vmatmul.mubr.bf16.gmra.mrb[0].mxu0 %v891
        %v953 = vpop.f32.mrb[0].mxu0
        %v954 = vadd.f32 0.0, %v953
        %v955 = vpop.f32.mrb[0].mxu0
        %v956 = vpop.f32.mrb[0].mxu0
        %v957 = vadd.f32 0.0, %v956
        %v958 = vpop.f32.mrb[0].mxu0
        %959 = vmatprep.mubr.bf16.mxu0 0
        %960 = vmatmul.mubr.bf16.gmra.mrb[0].mxu0 %v894
        %v961 = vpop.f32.mrb[0].mxu0
        %v962 = vadd.f32 0.0, %v961
        %v963 = vpop.f32.mrb[0].mxu0
        %v964 = vpop.f32.mrb[0].mxu0
        %v965 = vadd.f32 0.0, %v964
        %v966 = vpop.f32.mrb[0].mxu0
        %967 = vmatprep.mubr.bf16.mxu0 0
        %968 = vmatmul.mubr.bf16.gmra.mrb[0].mxu0 %v897
        %v969 = vpop.f32.mrb[0].mxu0
        %v970 = vadd.f32 0.0, %v969
        %v971 = vpop.f32.mrb[0].mxu0
        %v972 = vpop.f32.mrb[0].mxu0
        %v973 = vadd.f32 0.0, %v972
        %v974 = vpop.f32.mrb[0].mxu0
        %975 = vdwg.mxu0
        %v976 = vsel %vm598, %v946, -inf
        %977 = vmax.xlane.f32.xlu0 %v976
        %v978 = vpop.xlane.xlu0 %977
        %v979 = vsel %vm598, %v949, -inf
        %980 = vmax.xlane.f32.xlu0 %v979
        %v981 = vpop.xlane.xlu0 %980
        %v982 = vsel %vm598, %v954, -inf
        %983 = vmax.xlane.f32.xlu0 %v982
        %v984 = vpop.xlane.xlu0 %983
        %v985 = vsel %vm598, %v957, -inf
        %986 = vmax.xlane.f32.xlu0 %v985
        %v987 = vpop.xlane.xlu0 %986
        %v988 = vsel %vm598, %v962, -inf
        %989 = vmax.xlane.f32.xlu0 %v988
        %v990 = vpop.xlane.xlu0 %989
        %v991 = vsel %vm598, %v965, -inf
        %992 = vmax.xlane.f32.xlu0 %v991
        %v993 = vpop.xlane.xlu0 %992
        %v994 = vsel %vm598, %v970, -inf
        %995 = vmax.xlane.f32.xlu0 %v994
        %v996 = vpop.xlane.xlu0 %995
        %v997 = vsel %vm598, %v973, -inf
        %998 = vmax.xlane.f32.xlu0 %v997
        %v999 = vpop.xlane.xlu0 %998
        %v1000 = vsub.f32 %v946, %v978
        %v1001 = vsub.f32 %v949, %v981
        %v1002 = vsub.f32 %v954, %v984
        %v1003 = vsub.f32 %v957, %v987
        %v1004 = vsub.f32 %v962, %v990
        %v1005 = vsub.f32 %v965, %v993
        %v1006 = vsub.f32 %v970, %v996
        %v1007 = vsub.f32 %v973, %v999
        %v1008 = vmul.f32 %v1000, 1.442695
        %v1009 = vpow.pop %v1008
        %v1010 = vmul.f32 %v1001, 1.442695
        %v1011 = vpow.pop %v1010
        %v1012 = vmul.f32 %v1002, 1.442695
        %v1013 = vpow.pop %v1012
        %v1014 = vmul.f32 %v1003, 1.442695
        %v1015 = vpow.pop %v1014
        %v1016 = vmul.f32 %v1004, 1.442695
        %v1017 = vpow.pop %v1016
        %v1018 = vmul.f32 %v1005, 1.442695
        %v1019 = vpow.pop %v1018
        %v1020 = vmul.f32 %v1006, 1.442695
        %v1021 = vpow.pop %v1020
        %v1022 = vmul.f32 %v1007, 1.442695
        %v1023 = vpow.pop %v1022
        %v1024 = vsel %vm598, %v1009, 0.0
        %1025 = vadd.xlane.f32.xlu0 %v1024
        %v1026 = vpop.xlane.xlu0 %1025
        %v1027 = vsel %vm598, %v1011, 0.0
        %1028 = vadd.xlane.f32.xlu0 %v1027
        %v1029 = vpop.xlane.xlu0 %1028
        %v1030 = vsel %vm598, %v1013, 0.0
        %1031 = vadd.xlane.f32.xlu0 %v1030
        %v1032 = vpop.xlane.xlu0 %1031
        %v1033 = vsel %vm598, %v1015, 0.0
        %1034 = vadd.xlane.f32.xlu0 %v1033
        %v1035 = vpop.xlane.xlu0 %1034
        %v1036 = vsel %vm598, %v1017, 0.0
        %1037 = vadd.xlane.f32.xlu0 %v1036
        %v1038 = vpop.xlane.xlu0 %1037
        %v1039 = vsel %vm598, %v1019, 0.0
        %1040 = vadd.xlane.f32.xlu0 %v1039
        %v1041 = vpop.xlane.xlu0 %1040
        %v1042 = vsel %vm598, %v1021, 0.0
        %1043 = vadd.xlane.f32.xlu0 %v1042
        %v1044 = vpop.xlane.xlu0 %1043
        %v1045 = vsel %vm598, %v1023, 0.0
        %1046 = vadd.xlane.f32.xlu0 %v1045
        %v1047 = vpop.xlane.xlu0 %1046
        %v1048 = vrcp.pop %v1026
        %v1049 = vrcp.pop %v1029
        %v1050 = vrcp.pop %v1032
        %v1051 = vrcp.pop %v1035
        %v1052 = vrcp.pop %v1038
        %v1053 = vrcp.pop %v1041
        %v1054 = vrcp.pop %v1044
        %v1055 = vrcp.pop %v1047
        %v1056 = vmul.f32 %v1009, %v1048
        %v1057 = vmul.f32 %v1011, %v1049
        %v1058 = vmul.f32 %v1013, %v1050
        %v1059 = vmul.f32 %v1015, %v1051
        %v1060 = vmul.f32 %v1017, %v1052
        %v1061 = vmul.f32 %v1019, %v1053
        %v1062 = vmul.f32 %v1021, %v1054
        %v1063 = vmul.f32 %v1023, %v1055
        %v1064 = vpack.c.bf16 %v1057, %v1056
        %v1065 = vpack.c.bf16 %v1059, %v1058
        %v1066 = vpack.c.bf16 %v1061, %v1060
        %v1067 = vpack.c.bf16 %v1063, %v1062
        %v1069 = vsel %vm598, %v1064, 0
        %v1072 = vsel %vm598, %v1065, 0
        %v1075 = vsel %vm598, %v1066, 0
        %v1078 = vsel %vm598, %v1067, 0
        %1080 = vmatprep.subr.bf16.mxu0 0
        %1081 = vmatpush1.bf16.msra.mxu0 %v882
        %1082 = vmatprep.subr.bf16.mxu0 0
        %1083 = vmatpush1.bf16.msra.mxu0 %v883
        %1084 = vmatprep.subr.bf16.mxu0 0
        %1085 = vmatpush1.bf16.msra.mxu0 %v884
        %1086 = vmatprep.subr.bf16.mxu0 0
        %1087 = vmatpush1.bf16.msra.mxu0 %v885
        %1088 = vmatprep.subr.bf16.mxu0 0
        %1089 = vmatpush1.bf16.msra.mxu0 0
        %1090 = vmatprep.subr.bf16.mxu0 0
        %1091 = vmatpush1.bf16.msra.mxu0 0
        %1092 = vmatprep.subr.bf16.mxu0 0
        %1093 = vmatpush1.bf16.msra.mxu0 0
        %1094 = vmatprep.subr.bf16.mxu0 0
        %1095 = vmatpush1.bf16.msra.mxu0 0
        %1096 = vmatprep.subr.bf16.mxu0 0
        %1097 = vmatpush1.bf16.msra.mxu0 0
        %1098 = vmatprep.subr.bf16.mxu0 0
        %1099 = vmatpush1.bf16.msra.mxu0 0
        %1100 = vmatprep.subr.bf16.mxu0 0
        %1101 = vmatpush1.bf16.msra.mxu0 0
        %1102 = vmatprep.subr.bf16.mxu0 0
        %1103 = vmatpush1.bf16.msra.mxu0 0
        %1104 = vmatprep.subr.bf16.mxu0 0
        %1105 = vmatpush1.bf16.msra.mxu0 0
        %1106 = vmatprep.subr.bf16.mxu0 0
        %1107 = vmatpush1.bf16.msra.mxu0 0
        %1108 = vmatprep.subr.bf16.mxu0 0
        %1109 = vmatpush1.bf16.msra.mxu0 0
        %1110 = vmatprep.subr.bf16.mxu0 0
        %1111 = vmatpush1.bf16.msra.mxu0 0
        %1112 = vmatprep.mubr.bf16.mxu0 0
        %1113 = vmatmul.mubr.bf16.gmra.mrb[0].mxu0 %v1069
        %v1114 = vpop.f32.mrb[0].mxu0
        %v1115 = vadd.f32 0.0, %v1114
        %v1116 = vpop.f32.mrb[0].mxu0
        %v1117 = vpop.f32.mrb[0].mxu0
        %v1118 = vadd.f32 0.0, %v1117
        %v1119 = vpop.f32.mrb[0].mxu0
        %1120 = vmatprep.mubr.bf16.mxu0 0
        %1121 = vmatmul.mubr.bf16.gmra.mrb[0].mxu0 %v1072
        %v1122 = vpop.f32.mrb[0].mxu0
        %v1123 = vadd.f32 0.0, %v1122
        %v1124 = vpop.f32.mrb[0].mxu0
        %v1125 = vpop.f32.mrb[0].mxu0
        %v1126 = vadd.f32 0.0, %v1125
        %v1127 = vpop.f32.mrb[0].mxu0
        %1128 = vmatprep.mubr.bf16.mxu0 0
        %1129 = vmatmul.mubr.bf16.gmra.mrb[0].mxu0 %v1075
        %v1130 = vpop.f32.mrb[0].mxu0
        %v1131 = vadd.f32 0.0, %v1130
        %v1132 = vpop.f32.mrb[0].mxu0
        %v1133 = vpop.f32.mrb[0].mxu0
        %v1134 = vadd.f32 0.0, %v1133
        %v1135 = vpop.f32.mrb[0].mxu0
        %1136 = vmatprep.mubr.bf16.mxu0 0
        %1137 = vmatmul.mubr.bf16.gmra.mrb[0].mxu0 %v1078
        %v1138 = vpop.f32.mrb[0].mxu0
        %v1139 = vadd.f32 0.0, %v1138
        %v1140 = vpop.f32.mrb[0].mxu0
        %v1141 = vpop.f32.mrb[0].mxu0
        %v1142 = vadd.f32 0.0, %v1141
        %v1143 = vpop.f32.mrb[0].mxu0
        %1144 = vdwg.mxu0
        %1145 = vst.msk [vmem:[#allocation3] sm:$0xff] %vm886, %v1115
        %1146 = vst.msk [vmem:[#allocation3 + $0x8] sm:$0xff] %vm886, %v1118
        %1147 = vst.msk [vmem:[#allocation3 + $0x10] sm:$0xff] %vm886, %v1123
        %1148 = vst.msk [vmem:[#allocation3 + $0x18] sm:$0xff] %vm886, %v1126
        %1149 = vst.msk [vmem:[#allocation3 + $0x20] sm:$0xff] %vm886, %v1131
        %1150 = vst.msk [vmem:[#allocation3 + $0x28] sm:$0xff] %vm886, %v1134
        %1151 = vst.msk [vmem:[#allocation3 + $0x30] sm:$0xff] %vm886, %v1139
        %1152 = vst.msk [vmem:[#allocation3 + $0x38] sm:$0xff] %vm886, %v1142
        %1157 = vrot.lane.b32.xlu0 %v676, 112
        %v1158 = vpop.permute.xlu0 %1157
        %1159 = vrot.lane.b32.xlu0 %v677, 112
        %v1160 = vpop.permute.xlu0 %1159
        %1161 = vrot.lane.b32.xlu0 %v678, 112
        %v1162 = vpop.permute.xlu0 %1161
        %1163 = vrot.lane.b32.xlu0 %v679, 112
        %v1164 = vpop.permute.xlu0 %1163
        %1169 = vrot.lane.b32.xlu0 %v779, 112
        %v1170 = vpop.permute.xlu0 %1169
        %1171 = vrot.lane.b32.xlu0 %v780, 112
        %v1172 = vpop.permute.xlu0 %1171
        %1173 = vrot.lane.b32.xlu0 %v781, 112
        %v1174 = vpop.permute.xlu0 %1173
        %1175 = vrot.lane.b32.xlu0 %v782, 112
        %v1176 = vpop.permute.xlu0 %1175
        %v1178 = vsel %vm886, %v1158, 0
        %v1181 = vsel %vm886, %v1160, 0
        %v1184 = vsel %vm886, %v1162, 0
        %v1187 = vsel %vm886, %v1164, 0
        %v1190 = vsel %vm886, %v1170, 0
        %v1193 = vsel %vm886, %v1172, 0
        %v1196 = vsel %vm886, %v1174, 0
        %v1199 = vsel %vm886, %v1176, 0
        %1201 = vmatprep.subr.bf16.mxu0 0
        %1202 = vmatpush1.bf16.xpose.msra.mxu0 %v1190
        %1203 = vmatprep.subr.bf16.mxu0 0
        %1204 = vmatpush1.bf16.xpose.msra.mxu0 %v1193
        %1205 = vmatprep.subr.bf16.mxu0 0
        %1206 = vmatpush1.bf16.xpose.msra.mxu0 %v1196
        %1207 = vmatprep.subr.bf16.mxu0 0
        %1208 = vmatpush1.bf16.xpose.msra.mxu0 %v1199
        %1209 = vmatprep.subr.bf16.mxu0 0
        %1210 = vmatpush1.bf16.xpose.msra.mxu0 0
        %1211 = vmatprep.subr.bf16.mxu0 0
        %1212 = vmatpush1.bf16.xpose.msra.mxu0 0
        %1213 = vmatprep.subr.bf16.mxu0 0
        %1214 = vmatpush1.bf16.xpose.msra.mxu0 0
        %1215 = vmatprep.subr.bf16.mxu0 0
        %1216 = vmatpush1.bf16.xpose.msra.mxu0 0
        %1217 = vmatprep.subr.bf16.mxu0 0
        %1218 = vmatpush1.bf16.xpose.msra.mxu0 0
        %1219 = vmatprep.subr.bf16.mxu0 0
        %1220 = vmatpush1.bf16.xpose.msra.mxu0 0
        %1221 = vmatprep.subr.bf16.mxu0 0
        %1222 = vmatpush1.bf16.xpose.msra.mxu0 0
        %1223 = vmatprep.subr.bf16.mxu0 0
        %1224 = vmatpush1.bf16.xpose.msra.mxu0 0
        %1225 = vmatprep.subr.bf16.mxu0 0
        %1226 = vmatpush1.bf16.xpose.msra.mxu0 0
        %1227 = vmatprep.subr.bf16.mxu0 0
        %1228 = vmatpush1.bf16.xpose.msra.mxu0 0
        %1229 = vmatprep.subr.bf16.mxu0 0
        %1230 = vmatpush1.bf16.xpose.msra.mxu0 0
        %1231 = vmatprep.subr.bf16.mxu0 0
        %1232 = vmatpush1.bf16.xpose.msra.mxu0 0
        %1233 = vmatprep.mubr.bf16.mxu0 0
        %1234 = vmatmul.mubr.bf16.gmra.mrb[0].mxu0 %v1178
        %v1235 = vpop.f32.mrb[0].mxu0
        %v1236 = vadd.f32 0.0, %v1235
        %v1237 = vpop.f32.mrb[0].mxu0
        %v1238 = vpop.f32.mrb[0].mxu0
        %v1239 = vadd.f32 0.0, %v1238
        %v1240 = vpop.f32.mrb[0].mxu0
        %1241 = vmatprep.mubr.bf16.mxu0 0
        %1242 = vmatmul.mubr.bf16.gmra.mrb[0].mxu0 %v1181
        %v1243 = vpop.f32.mrb[0].mxu0
        %v1244 = vadd.f32 0.0, %v1243
        %v1245 = vpop.f32.mrb[0].mxu0
        %v1246 = vpop.f32.mrb[0].mxu0
        %v1247 = vadd.f32 0.0, %v1246
        %v1248 = vpop.f32.mrb[0].mxu0
        %1249 = vmatprep.mubr.bf16.mxu0 0
        %1250 = vmatmul.mubr.bf16.gmra.mrb[0].mxu0 %v1184
        %v1251 = vpop.f32.mrb[0].mxu0
        %v1252 = vadd.f32 0.0, %v1251
        %v1253 = vpop.f32.mrb[0].mxu0
        %v1254 = vpop.f32.mrb[0].mxu0
        %v1255 = vadd.f32 0.0, %v1254
        %v1256 = vpop.f32.mrb[0].mxu0
        %1257 = vmatprep.mubr.bf16.mxu0 0
        %1258 = vmatmul.mubr.bf16.gmra.mrb[0].mxu0 %v1187
        %v1259 = vpop.f32.mrb[0].mxu0
        %v1260 = vadd.f32 0.0, %v1259
        %v1261 = vpop.f32.mrb[0].mxu0
        %v1262 = vpop.f32.mrb[0].mxu0
        %v1263 = vadd.f32 0.0, %v1262
        %v1264 = vpop.f32.mrb[0].mxu0
        %1265 = vdwg.mxu0
        %v1266 = vsel %vm598, %v1236, -inf
        %1267 = vmax.xlane.f32.xlu0 %v1266
        %v1268 = vpop.xlane.xlu0 %1267
        %v1269 = vsel %vm598, %v1239, -inf
        %1270 = vmax.xlane.f32.xlu0 %v1269
        %v1271 = vpop.xlane.xlu0 %1270
        %v1272 = vsel %vm598, %v1244, -inf
        %1273 = vmax.xlane.f32.xlu0 %v1272
        %v1274 = vpop.xlane.xlu0 %1273
        %v1275 = vsel %vm598, %v1247, -inf
        %1276 = vmax.xlane.f32.xlu0 %v1275
        %v1277 = vpop.xlane.xlu0 %1276
        %v1278 = vsel %vm598, %v1252, -inf
        %1279 = vmax.xlane.f32.xlu0 %v1278
        %v1280 = vpop.xlane.xlu0 %1279
        %v1281 = vsel %vm598, %v1255, -inf
        %1282 = vmax.xlane.f32.xlu0 %v1281
        %v1283 = vpop.xlane.xlu0 %1282
        %v1284 = vsel %vm598, %v1260, -inf
        %1285 = vmax.xlane.f32.xlu0 %v1284
        %v1286 = vpop.xlane.xlu0 %1285
        %v1287 = vsel %vm598, %v1263, -inf
        %1288 = vmax.xlane.f32.xlu0 %v1287
        %v1289 = vpop.xlane.xlu0 %1288
        %v1290 = vsub.f32 %v1236, %v1268
        %v1291 = vsub.f32 %v1239, %v1271
        %v1292 = vsub.f32 %v1244, %v1274
        %v1293 = vsub.f32 %v1247, %v1277
        %v1294 = vsub.f32 %v1252, %v1280
        %v1295 = vsub.f32 %v1255, %v1283
        %v1296 = vsub.f32 %v1260, %v1286
        %v1297 = vsub.f32 %v1263, %v1289
        %v1298 = vmul.f32 %v1290, 1.442695
        %v1299 = vpow.pop %v1298
        %v1300 = vmul.f32 %v1291, 1.442695
        %v1301 = vpow.pop %v1300
        %v1302 = vmul.f32 %v1292, 1.442695
        %v1303 = vpow.pop %v1302
        %v1304 = vmul.f32 %v1293, 1.442695
        %v1305 = vpow.pop %v1304
        %v1306 = vmul.f32 %v1294, 1.442695
        %v1307 = vpow.pop %v1306
        %v1308 = vmul.f32 %v1295, 1.442695
        %v1309 = vpow.pop %v1308
        %v1310 = vmul.f32 %v1296, 1.442695
        %v1311 = vpow.pop %v1310
        %v1312 = vmul.f32 %v1297, 1.442695
        %v1313 = vpow.pop %v1312
        %v1314 = vsel %vm598, %v1299, 0.0
        %1315 = vadd.xlane.f32.xlu0 %v1314
        %v1316 = vpop.xlane.xlu0 %1315
        %v1317 = vsel %vm598, %v1301, 0.0
        %1318 = vadd.xlane.f32.xlu0 %v1317
        %v1319 = vpop.xlane.xlu0 %1318
        %v1320 = vsel %vm598, %v1303, 0.0
        %1321 = vadd.xlane.f32.xlu0 %v1320
        %v1322 = vpop.xlane.xlu0 %1321
        %v1323 = vsel %vm598, %v1305, 0.0
        %1324 = vadd.xlane.f32.xlu0 %v1323
        %v1325 = vpop.xlane.xlu0 %1324
        %v1326 = vsel %vm598, %v1307, 0.0
        %1327 = vadd.xlane.f32.xlu0 %v1326
        %v1328 = vpop.xlane.xlu0 %1327
        %v1329 = vsel %vm598, %v1309, 0.0
        %1330 = vadd.xlane.f32.xlu0 %v1329
        %v1331 = vpop.xlane.xlu0 %1330
        %v1332 = vsel %vm598, %v1311, 0.0
        %1333 = vadd.xlane.f32.xlu0 %v1332
        %v1334 = vpop.xlane.xlu0 %1333
        %v1335 = vsel %vm598, %v1313, 0.0
        %1336 = vadd.xlane.f32.xlu0 %v1335
        %v1337 = vpop.xlane.xlu0 %1336
        %v1338 = vrcp.pop %v1316
        %v1339 = vrcp.pop %v1319
        %v1340 = vrcp.pop %v1322
        %v1341 = vrcp.pop %v1325
        %v1342 = vrcp.pop %v1328
        %v1343 = vrcp.pop %v1331
        %v1344 = vrcp.pop %v1334
        %v1345 = vrcp.pop %v1337
        %v1346 = vmul.f32 %v1299, %v1338
        %v1347 = vmul.f32 %v1301, %v1339
        %v1348 = vmul.f32 %v1303, %v1340
        %v1349 = vmul.f32 %v1305, %v1341
        %v1350 = vmul.f32 %v1307, %v1342
        %v1351 = vmul.f32 %v1309, %v1343
        %v1352 = vmul.f32 %v1311, %v1344
        %v1353 = vmul.f32 %v1313, %v1345
        %v1354 = vpack.c.bf16 %v1347, %v1346
        %v1355 = vpack.c.bf16 %v1349, %v1348
        %v1356 = vpack.c.bf16 %v1351, %v1350
        %v1357 = vpack.c.bf16 %v1353, %v1352
        %1362 = vrot.lane.b32.xlu0 %v882, 112
        %v1363 = vpop.permute.xlu0 %1362
        %1364 = vrot.lane.b32.xlu0 %v883, 112
        %v1365 = vpop.permute.xlu0 %1364
        %1366 = vrot.lane.b32.xlu0 %v884, 112
        %v1367 = vpop.permute.xlu0 %1366
        %1368 = vrot.lane.b32.xlu0 %v885, 112
        %v1369 = vpop.permute.xlu0 %1368
        %v1375 = vsel %vm598, %v1354, 0
        %v1378 = vsel %vm598, %v1355, 0
        %v1381 = vsel %vm598, %v1356, 0
        %v1384 = vsel %vm598, %v1357, 0
        %1386 = vmatprep.subr.bf16.mxu0 0
        %1387 = vmatpush1.bf16.msra.mxu0 %v1363
        %1388 = vmatprep.subr.bf16.mxu0 0
        %1389 = vmatpush1.bf16.msra.mxu0 %v1365
        %1390 = vmatprep.subr.bf16.mxu0 0
        %1391 = vmatpush1.bf16.msra.mxu0 %v1367
        %1392 = vmatprep.subr.bf16.mxu0 0
        %1393 = vmatpush1.bf16.msra.mxu0 %v1369
        %1394 = vmatprep.subr.bf16.mxu0 0
        %1395 = vmatpush1.bf16.msra.mxu0 0
        %1396 = vmatprep.subr.bf16.mxu0 0
        %1397 = vmatpush1.bf16.msra.mxu0 0
        %1398 = vmatprep.subr.bf16.mxu0 0
        %1399 = vmatpush1.bf16.msra.mxu0 0
        %1400 = vmatprep.subr.bf16.mxu0 0
        %1401 = vmatpush1.bf16.msra.mxu0 0
        %1402 = vmatprep.subr.bf16.mxu0 0
        %1403 = vmatpush1.bf16.msra.mxu0 0
        %1404 = vmatprep.subr.bf16.mxu0 0
        %1405 = vmatpush1.bf16.msra.mxu0 0
        %1406 = vmatprep.subr.bf16.mxu0 0
        %1407 = vmatpush1.bf16.msra.mxu0 0
        %1408 = vmatprep.subr.bf16.mxu0 0
        %1409 = vmatpush1.bf16.msra.mxu0 0
        %1410 = vmatprep.subr.bf16.mxu0 0
        %1411 = vmatpush1.bf16.msra.mxu0 0
        %1412 = vmatprep.subr.bf16.mxu0 0
        %1413 = vmatpush1.bf16.msra.mxu0 0
        %1414 = vmatprep.subr.bf16.mxu0 0
        %1415 = vmatpush1.bf16.msra.mxu0 0
        %1416 = vmatprep.subr.bf16.mxu0 0
        %1417 = vmatpush1.bf16.msra.mxu0 0
        %1418 = vmatprep.mubr.bf16.mxu0 0
        %1419 = vmatmul.mubr.bf16.gmra.mrb[0].mxu0 %v1375
        %v1420 = vpop.f32.mrb[0].mxu0
        %v1421 = vadd.f32 0.0, %v1420
        %v1422 = vpop.f32.mrb[0].mxu0
        %v1423 = vpop.f32.mrb[0].mxu0
        %v1424 = vadd.f32 0.0, %v1423
        %v1425 = vpop.f32.mrb[0].mxu0
        %1426 = vmatprep.mubr.bf16.mxu0 0
        %1427 = vmatmul.mubr.bf16.gmra.mrb[0].mxu0 %v1378
        %v1428 = vpop.f32.mrb[0].mxu0
        %v1429 = vadd.f32 0.0, %v1428
        %v1430 = vpop.f32.mrb[0].mxu0
        %v1431 = vpop.f32.mrb[0].mxu0
        %v1432 = vadd.f32 0.0, %v1431
        %v1433 = vpop.f32.mrb[0].mxu0
        %1434 = vmatprep.mubr.bf16.mxu0 0
        %1435 = vmatmul.mubr.bf16.gmra.mrb[0].mxu0 %v1381
        %v1436 = vpop.f32.mrb[0].mxu0
        %v1437 = vadd.f32 0.0, %v1436
        %v1438 = vpop.f32.mrb[0].mxu0
        %v1439 = vpop.f32.mrb[0].mxu0
        %v1440 = vadd.f32 0.0, %v1439
        %v1441 = vpop.f32.mrb[0].mxu0
        %1442 = vmatprep.mubr.bf16.mxu0 0
        %1443 = vmatmul.mubr.bf16.gmra.mrb[0].mxu0 %v1384
        %v1444 = vpop.f32.mrb[0].mxu0
        %v1445 = vadd.f32 0.0, %v1444
        %v1446 = vpop.f32.mrb[0].mxu0
        %v1447 = vpop.f32.mrb[0].mxu0
        %v1448 = vadd.f32 0.0, %v1447
        %v1449 = vpop.f32.mrb[0].mxu0
        %1450 = vdwg.mxu0
        %1459 = vrot.lane.b32.xlu0 %v1421, 16
        %v1460 = vpop.permute.xlu0 %1459
        %1461 = vrot.lane.b32.xlu0 %v1424, 16
        %v1462 = vpop.permute.xlu0 %1461
        %1463 = vrot.lane.b32.xlu0 %v1429, 16
        %v1464 = vpop.permute.xlu0 %1463
        %1465 = vrot.lane.b32.xlu0 %v1432, 16
        %v1466 = vpop.permute.xlu0 %1465
        %1467 = vrot.lane.b32.xlu0 %v1437, 16
        %v1468 = vpop.permute.xlu0 %1467
        %1469 = vrot.lane.b32.xlu0 %v1440, 16
        %v1470 = vpop.permute.xlu0 %1469
        %1471 = vrot.lane.b32.xlu0 %v1445, 16
        %v1472 = vpop.permute.xlu0 %1471
        %1473 = vrot.lane.b32.xlu0 %v1448, 16
        %v1474 = vpop.permute.xlu0 %1473
        %vm1483 = vcmask 261248
        %1484 = vst.msk [vmem:[#allocation3] sm:$0xff] %vm1483, %v1460
        %1485 = vst.msk [vmem:[#allocation3 + $0x8] sm:$0xff] %vm1483, %v1462
        %1486 = vst.msk [vmem:[#allocation3 + $0x10] sm:$0xff] %vm1483, %v1464
        %1487 = vst.msk [vmem:[#allocation3 + $0x18] sm:$0xff] %vm1483, %v1466
        %1488 = vst.msk [vmem:[#allocation3 + $0x20] sm:$0xff] %vm1483, %v1468
        %1489 = vst.msk [vmem:[#allocation3 + $0x28] sm:$0xff] %vm1483, %v1470
        %1490 = vst.msk [vmem:[#allocation3 + $0x30] sm:$0xff] %vm1483, %v1472
        %1491 = vst.msk [vmem:[#allocation3 + $0x38] sm:$0xff] %vm1483, %v1474
        %1492 = vrot.lane.b32.xlu0 %v676, 96
        %v1493 = vpop.permute.xlu0 %1492
        %1494 = vrot.lane.b32.xlu0 %v677, 96
        %v1495 = vpop.permute.xlu0 %1494
        %1496 = vrot.lane.b32.xlu0 %v678, 96
        %v1497 = vpop.permute.xlu0 %1496
        %1498 = vrot.lane.b32.xlu0 %v679, 96
        %v1499 = vpop.permute.xlu0 %1498
        %1500 = vrot.lane.b32.xlu0 %v779, 96
        %v1501 = vpop.permute.xlu0 %1500
        %1502 = vrot.lane.b32.xlu0 %v780, 96
        %v1503 = vpop.permute.xlu0 %1502
        %1504 = vrot.lane.b32.xlu0 %v781, 96
        %v1505 = vpop.permute.xlu0 %1504
        %1506 = vrot.lane.b32.xlu0 %v782, 96
        %v1507 = vpop.permute.xlu0 %1506
        %v1509 = vsel %vm886, %v1493, 0
        %v1512 = vsel %vm886, %v1495, 0
        %v1515 = vsel %vm886, %v1497, 0
        %v1518 = vsel %vm886, %v1499, 0
        %v1521 = vsel %vm886, %v1501, 0
        %v1524 = vsel %vm886, %v1503, 0
        %v1527 = vsel %vm886, %v1505, 0
        %v1530 = vsel %vm886, %v1507, 0
        %1532 = vmatprep.subr.bf16.mxu0 0
        %1533 = vmatpush1.bf16.xpose.msra.mxu0 %v1521
        %1534 = vmatprep.subr.bf16.mxu0 0
        %1535 = vmatpush1.bf16.xpose.msra.mxu0 %v1524
        %1536 = vmatprep.subr.bf16.mxu0 0
        %1537 = vmatpush1.bf16.xpose.msra.mxu0 %v1527
        %1538 = vmatprep.subr.bf16.mxu0 0
        %1539 = vmatpush1.bf16.xpose.msra.mxu0 %v1530
        %1540 = vmatprep.subr.bf16.mxu0 0
        %1541 = vmatpush1.bf16.xpose.msra.mxu0 0
        %1542 = vmatprep.subr.bf16.mxu0 0
        %1543 = vmatpush1.bf16.xpose.msra.mxu0 0
        %1544 = vmatprep.subr.bf16.mxu0 0
        %1545 = vmatpush1.bf16.xpose.msra.mxu0 0
        %1546 = vmatprep.subr.bf16.mxu0 0
        %1547 = vmatpush1.bf16.xpose.msra.mxu0 0
        %1548 = vmatprep.subr.bf16.mxu0 0
        %1549 = vmatpush1.bf16.xpose.msra.mxu0 0
        %1550 = vmatprep.subr.bf16.mxu0 0
        %1551 = vmatpush1.bf16.xpose.msra.mxu0 0
        %1552 = vmatprep.subr.bf16.mxu0 0
        %1553 = vmatpush1.bf16.xpose.msra.mxu0 0
        %1554 = vmatprep.subr.bf16.mxu0 0
        %1555 = vmatpush1.bf16.xpose.msra.mxu0 0
        %1556 = vmatprep.subr.bf16.mxu0 0
        %1557 = vmatpush1.bf16.xpose.msra.mxu0 0
        %1558 = vmatprep.subr.bf16.mxu0 0
        %1559 = vmatpush1.bf16.xpose.msra.mxu0 0
        %1560 = vmatprep.subr.bf16.mxu0 0
        %1561 = vmatpush1.bf16.xpose.msra.mxu0 0
        %1562 = vmatprep.subr.bf16.mxu0 0
        %1563 = vmatpush1.bf16.xpose.msra.mxu0 0
        %1564 = vmatprep.mubr.bf16.mxu0 0
        %1565 = vmatmul.mubr.bf16.gmra.mrb[0].mxu0 %v1509
        %v1566 = vpop.f32.mrb[0].mxu0
        %v1567 = vadd.f32 0.0, %v1566
        %v1568 = vpop.f32.mrb[0].mxu0
        %v1569 = vpop.f32.mrb[0].mxu0
        %v1570 = vadd.f32 0.0, %v1569
        %v1571 = vpop.f32.mrb[0].mxu0
        %1572 = vmatprep.mubr.bf16.mxu0 0
        %1573 = vmatmul.mubr.bf16.gmra.mrb[0].mxu0 %v1512
        %v1574 = vpop.f32.mrb[0].mxu0
        %v1575 = vadd.f32 0.0, %v1574
        %v1576 = vpop.f32.mrb[0].mxu0
        %v1577 = vpop.f32.mrb[0].mxu0
        %v1578 = vadd.f32 0.0, %v1577
        %v1579 = vpop.f32.mrb[0].mxu0
        %1580 = vmatprep.mubr.bf16.mxu0 0
        %1581 = vmatmul.mubr.bf16.gmra.mrb[0].mxu0 %v1515
        %v1582 = vpop.f32.mrb[0].mxu0
        %v1583 = vadd.f32 0.0, %v1582
        %v1584 = vpop.f32.mrb[0].mxu0
        %v1585 = vpop.f32.mrb[0].mxu0
        %v1586 = vadd.f32 0.0, %v1585
        %v1587 = vpop.f32.mrb[0].mxu0
        %1588 = vmatprep.mubr.bf16.mxu0 0
        %1589 = vmatmul.mubr.bf16.gmra.mrb[0].mxu0 %v1518
        %v1590 = vpop.f32.mrb[0].mxu0
        %v1591 = vadd.f32 0.0, %v1590
        %v1592 = vpop.f32.mrb[0].mxu0
        %v1593 = vpop.f32.mrb[0].mxu0
        %v1594 = vadd.f32 0.0, %v1593
        %v1595 = vpop.f32.mrb[0].mxu0
        %1596 = vdwg.mxu0
        %v1597 = vsel %vm598, %v1567, -inf
        %1598 = vmax.xlane.f32.xlu0 %v1597
        %v1599 = vpop.xlane.xlu0 %1598
        %v1600 = vsel %vm598, %v1570, -inf
        %1601 = vmax.xlane.f32.xlu0 %v1600
        %v1602 = vpop.xlane.xlu0 %1601
        %v1603 = vsel %vm598, %v1575, -inf
        %1604 = vmax.xlane.f32.xlu0 %v1603
        %v1605 = vpop.xlane.xlu0 %1604
        %v1606 = vsel %vm598, %v1578, -inf
        %1607 = vmax.xlane.f32.xlu0 %v1606
        %v1608 = vpop.xlane.xlu0 %1607
        %v1609 = vsel %vm598, %v1583, -inf
        %1610 = vmax.xlane.f32.xlu0 %v1609
        %v1611 = vpop.xlane.xlu0 %1610
        %v1612 = vsel %vm598, %v1586, -inf
        %1613 = vmax.xlane.f32.xlu0 %v1612
        %v1614 = vpop.xlane.xlu0 %1613
        %v1615 = vsel %vm598, %v1591, -inf
        %1616 = vmax.xlane.f32.xlu0 %v1615
        %v1617 = vpop.xlane.xlu0 %1616
        %v1618 = vsel %vm598, %v1594, -inf
        %1619 = vmax.xlane.f32.xlu0 %v1618
        %v1620 = vpop.xlane.xlu0 %1619
        %v1621 = vsub.f32 %v1567, %v1599
        %v1622 = vsub.f32 %v1570, %v1602
        %v1623 = vsub.f32 %v1575, %v1605
        %v1624 = vsub.f32 %v1578, %v1608
        %v1625 = vsub.f32 %v1583, %v1611
        %v1626 = vsub.f32 %v1586, %v1614
        %v1627 = vsub.f32 %v1591, %v1617
        %v1628 = vsub.f32 %v1594, %v1620
        %v1629 = vmul.f32 %v1621, 1.442695
        %v1630 = vpow.pop %v1629
        %v1631 = vmul.f32 %v1622, 1.442695
        %v1632 = vpow.pop %v1631
        %v1633 = vmul.f32 %v1623, 1.442695
        %v1634 = vpow.pop %v1633
        %v1635 = vmul.f32 %v1624, 1.442695
        %v1636 = vpow.pop %v1635
        %v1637 = vmul.f32 %v1625, 1.442695
        %v1638 = vpow.pop %v1637
        %v1639 = vmul.f32 %v1626, 1.442695
        %v1640 = vpow.pop %v1639
        %v1641 = vmul.f32 %v1627, 1.442695
        %v1642 = vpow.pop %v1641
        %v1643 = vmul.f32 %v1628, 1.442695
        %v1644 = vpow.pop %v1643
        %v1645 = vsel %vm598, %v1630, 0.0
        %1646 = vadd.xlane.f32.xlu0 %v1645
        %v1647 = vpop.xlane.xlu0 %1646
        %v1648 = vsel %vm598, %v1632, 0.0
        %1649 = vadd.xlane.f32.xlu0 %v1648
        %v1650 = vpop.xlane.xlu0 %1649
        %v1651 = vsel %vm598, %v1634, 0.0
        %1652 = vadd.xlane.f32.xlu0 %v1651
        %v1653 = vpop.xlane.xlu0 %1652
        %v1654 = vsel %vm598, %v1636, 0.0
        %1655 = vadd.xlane.f32.xlu0 %v1654
        %v1656 = vpop.xlane.xlu0 %1655
        %v1657 = vsel %vm598, %v1638, 0.0
        %1658 = vadd.xlane.f32.xlu0 %v1657
        %v1659 = vpop.xlane.xlu0 %1658
        %v1660 = vsel %vm598, %v1640, 0.0
        %1661 = vadd.xlane.f32.xlu0 %v1660
        %v1662 = vpop.xlane.xlu0 %1661
        %v1663 = vsel %vm598, %v1642, 0.0
        %1664 = vadd.xlane.f32.xlu0 %v1663
        %v1665 = vpop.xlane.xlu0 %1664
        %v1666 = vsel %vm598, %v1644, 0.0
        %1667 = vadd.xlane.f32.xlu0 %v1666
        %v1668 = vpop.xlane.xlu0 %1667
        %v1669 = vrcp.pop %v1647
        %v1670 = vrcp.pop %v1650
        %v1671 = vrcp.pop %v1653
        %v1672 = vrcp.pop %v1656
        %v1673 = vrcp.pop %v1659
        %v1674 = vrcp.pop %v1662
        %v1675 = vrcp.pop %v1665
        %v1676 = vrcp.pop %v1668
        %v1677 = vmul.f32 %v1630, %v1669
        %v1678 = vmul.f32 %v1632, %v1670
        %v1679 = vmul.f32 %v1634, %v1671
        %v1680 = vmul.f32 %v1636, %v1672
        %v1681 = vmul.f32 %v1638, %v1673
        %v1682 = vmul.f32 %v1640, %v1674
        %v1683 = vmul.f32 %v1642, %v1675
        %v1684 = vmul.f32 %v1644, %v1676
        %v1685 = vpack.c.bf16 %v1678, %v1677
        %v1686 = vpack.c.bf16 %v1680, %v1679
        %v1687 = vpack.c.bf16 %v1682, %v1681
        %v1688 = vpack.c.bf16 %v1684, %v1683
        %1689 = vrot.lane.b32.xlu0 %v882, 96
        %v1690 = vpop.permute.xlu0 %1689
        %1691 = vrot.lane.b32.xlu0 %v883, 96
        %v1692 = vpop.permute.xlu0 %1691
        %1693 = vrot.lane.b32.xlu0 %v884, 96
        %v1694 = vpop.permute.xlu0 %1693
        %1695 = vrot.lane.b32.xlu0 %v885, 96
        %v1696 = vpop.permute.xlu0 %1695
        %v1702 = vsel %vm598, %v1685, 0
        %v1705 = vsel %vm598, %v1686, 0
        %v1708 = vsel %vm598, %v1687, 0
        %v1711 = vsel %vm598, %v1688, 0
        %1713 = vmatprep.subr.bf16.mxu0 0
        %1714 = vmatpush1.bf16.msra.mxu0 %v1690
        %1715 = vmatprep.subr.bf16.mxu0 0
        %1716 = vmatpush1.bf16.msra.mxu0 %v1692
        %1717 = vmatprep.subr.bf16.mxu0 0
        %1718 = vmatpush1.bf16.msra.mxu0 %v1694
        %1719 = vmatprep.subr.bf16.mxu0 0
        %1720 = vmatpush1.bf16.msra.mxu0 %v1696
        %1721 = vmatprep.subr.bf16.mxu0 0
        %1722 = vmatpush1.bf16.msra.mxu0 0
        %1723 = vmatprep.subr.bf16.mxu0 0
        %1724 = vmatpush1.bf16.msra.mxu0 0
        %1725 = vmatprep.subr.bf16.mxu0 0
        %1726 = vmatpush1.bf16.msra.mxu0 0
        %1727 = vmatprep.subr.bf16.mxu0 0
        %1728 = vmatpush1.bf16.msra.mxu0 0
        %1729 = vmatprep.subr.bf16.mxu0 0
        %1730 = vmatpush1.bf16.msra.mxu0 0
        %1731 = vmatprep.subr.bf16.mxu0 0
        %1732 = vmatpush1.bf16.msra.mxu0 0
        %1733 = vmatprep.subr.bf16.mxu0 0
        %1734 = vmatpush1.bf16.msra.mxu0 0
        %1735 = vmatprep.subr.bf16.mxu0 0
        %1736 = vmatpush1.bf16.msra.mxu0 0
        %1737 = vmatprep.subr.bf16.mxu0 0
        %1738 = vmatpush1.bf16.msra.mxu0 0
        %1739 = vmatprep.subr.bf16.mxu0 0
        %1740 = vmatpush1.bf16.msra.mxu0 0
        %1741 = vmatprep.subr.bf16.mxu0 0
        %1742 = vmatpush1.bf16.msra.mxu0 0
        %1743 = vmatprep.subr.bf16.mxu0 0
        %1744 = vmatpush1.bf16.msra.mxu0 0
        %1745 = vmatprep.mubr.bf16.mxu0 0
        %1746 = vmatmul.mubr.bf16.gmra.mrb[0].mxu0 %v1702
        %v1747 = vpop.f32.mrb[0].mxu0
        %v1748 = vadd.f32 0.0, %v1747
        %v1749 = vpop.f32.mrb[0].mxu0
        %v1750 = vpop.f32.mrb[0].mxu0
        %v1751 = vadd.f32 0.0, %v1750
        %v1752 = vpop.f32.mrb[0].mxu0
        %1753 = vmatprep.mubr.bf16.mxu0 0
        %1754 = vmatmul.mubr.bf16.gmra.mrb[0].mxu0 %v1705
        %v1755 = vpop.f32.mrb[0].mxu0
        %v1756 = vadd.f32 0.0, %v1755
        %v1757 = vpop.f32.mrb[0].mxu0
        %v1758 = vpop.f32.mrb[0].mxu0
        %v1759 = vadd.f32 0.0, %v1758
        %v1760 = vpop.f32.mrb[0].mxu0
        %1761 = vmatprep.mubr.bf16.mxu0 0
        %1762 = vmatmul.mubr.bf16.gmra.mrb[0].mxu0 %v1708
        %v1763 = vpop.f32.mrb[0].mxu0
        %v1764 = vadd.f32 0.0, %v1763
        %v1765 = vpop.f32.mrb[0].mxu0
        %v1766 = vpop.f32.mrb[0].mxu0
        %v1767 = vadd.f32 0.0, %v1766
        %v1768 = vpop.f32.mrb[0].mxu0
        %1769 = vmatprep.mubr.bf16.mxu0 0
        %1770 = vmatmul.mubr.bf16.gmra.mrb[0].mxu0 %v1711
        %v1771 = vpop.f32.mrb[0].mxu0
        %v1772 = vadd.f32 0.0, %v1771
        %v1773 = vpop.f32.mrb[0].mxu0
        %v1774 = vpop.f32.mrb[0].mxu0
        %v1775 = vadd.f32 0.0, %v1774
        %v1776 = vpop.f32.mrb[0].mxu0
        %1777 = vdwg.mxu0
        %1786 = vrot.lane.b32.xlu0 %v1748, 32
        %v1787 = vpop.permute.xlu0 %1786
        %1788 = vrot.lane.b32.xlu0 %v1751, 32
        %v1789 = vpop.permute.xlu0 %1788
        %1790 = vrot.lane.b32.xlu0 %v1756, 32
        %v1791 = vpop.permute.xlu0 %1790
        %1792 = vrot.lane.b32.xlu0 %v1759, 32
        %v1793 = vpop.permute.xlu0 %1792
        %1794 = vrot.lane.b32.xlu0 %v1764, 32
        %v1795 = vpop.permute.xlu0 %1794
        %1796 = vrot.lane.b32.xlu0 %v1767, 32
        %v1797 = vpop.permute.xlu0 %1796
        %1798 = vrot.lane.b32.xlu0 %v1772, 32
        %v1799 = vpop.permute.xlu0 %1798
        %1800 = vrot.lane.b32.xlu0 %v1775, 32
        %v1801 = vpop.permute.xlu0 %1800
        %vm1810 = vcmask 392448
        %1811 = vst.msk [vmem:[#allocation3] sm:$0xff] %vm1810, %v1787
        %1812 = vst.msk [vmem:[#allocation3 + $0x8] sm:$0xff] %vm1810, %v1789
        %1813 = vst.msk [vmem:[#allocation3 + $0x10] sm:$0xff] %vm1810, %v1791
        %1814 = vst.msk [vmem:[#allocation3 + $0x18] sm:$0xff] %vm1810, %v1793
        %1815 = vst.msk [vmem:[#allocation3 + $0x20] sm:$0xff] %vm1810, %v1795
        %1816 = vst.msk [vmem:[#allocation3 + $0x28] sm:$0xff] %vm1810, %v1797
        %1817 = vst.msk [vmem:[#allocation3 + $0x30] sm:$0xff] %vm1810, %v1799
        %1818 = vst.msk [vmem:[#allocation3 + $0x38] sm:$0xff] %vm1810, %v1801
        %1819 = vrot.lane.b32.xlu0 %v676, 80
        %v1820 = vpop.permute.xlu0 %1819
        %1821 = vrot.lane.b32.xlu0 %v677, 80
        %v1822 = vpop.permute.xlu0 %1821
        %1823 = vrot.lane.b32.xlu0 %v678, 80
        %v1824 = vpop.permute.xlu0 %1823
        %1825 = vrot.lane.b32.xlu0 %v679, 80
        %v1826 = vpop.permute.xlu0 %1825
        %1827 = vrot.lane.b32.xlu0 %v779, 80
        %v1828 = vpop.permute.xlu0 %1827
        %1829 = vrot.lane.b32.xlu0 %v780, 80
        %v1830 = vpop.permute.xlu0 %1829
        %1831 = vrot.lane.b32.xlu0 %v781, 80
        %v1832 = vpop.permute.xlu0 %1831
        %1833 = vrot.lane.b32.xlu0 %v782, 80
        %v1834 = vpop.permute.xlu0 %1833
        %v1836 = vsel %vm886, %v1820, 0
        %v1839 = vsel %vm886, %v1822, 0
        %v1842 = vsel %vm886, %v1824, 0
        %v1845 = vsel %vm886, %v1826, 0
        %v1848 = vsel %vm886, %v1828, 0
        %v1851 = vsel %vm886, %v1830, 0
        %v1854 = vsel %vm886, %v1832, 0
        %v1857 = vsel %vm886, %v1834, 0
        %1859 = vmatprep.subr.bf16.mxu0 0
        %1860 = vmatpush1.bf16.xpose.msra.mxu0 %v1848
        %1861 = vmatprep.subr.bf16.mxu0 0
        %1862 = vmatpush1.bf16.xpose.msra.mxu0 %v1851
        %1863 = vmatprep.subr.bf16.mxu0 0
        %1864 = vmatpush1.bf16.xpose.msra.mxu0 %v1854
        %1865 = vmatprep.subr.bf16.mxu0 0
        %1866 = vmatpush1.bf16.xpose.msra.mxu0 %v1857
        %1867 = vmatprep.subr.bf16.mxu0 0
        %1868 = vmatpush1.bf16.xpose.msra.mxu0 0
        %1869 = vmatprep.subr.bf16.mxu0 0
        %1870 = vmatpush1.bf16.xpose.msra.mxu0 0
        %1871 = vmatprep.subr.bf16.mxu0 0
        %1872 = vmatpush1.bf16.xpose.msra.mxu0 0
        %1873 = vmatprep.subr.bf16.mxu0 0
        %1874 = vmatpush1.bf16.xpose.msra.mxu0 0
        %1875 = vmatprep.subr.bf16.mxu0 0
        %1876 = vmatpush1.bf16.xpose.msra.mxu0 0
        %1877 = vmatprep.subr.bf16.mxu0 0
        %1878 = vmatpush1.bf16.xpose.msra.mxu0 0
        %1879 = vmatprep.subr.bf16.mxu0 0
        %1880 = vmatpush1.bf16.xpose.msra.mxu0 0
        %1881 = vmatprep.subr.bf16.mxu0 0
        %1882 = vmatpush1.bf16.xpose.msra.mxu0 0
        %1883 = vmatprep.subr.bf16.mxu0 0
        %1884 = vmatpush1.bf16.xpose.msra.mxu0 0
        %1885 = vmatprep.subr.bf16.mxu0 0
        %1886 = vmatpush1.bf16.xpose.msra.mxu0 0
        %1887 = vmatprep.subr.bf16.mxu0 0
        %1888 = vmatpush1.bf16.xpose.msra.mxu0 0
        %1889 = vmatprep.subr.bf16.mxu0 0
        %1890 = vmatpush1.bf16.xpose.msra.mxu0 0
        %1891 = vmatprep.mubr.bf16.mxu0 0
        %1892 = vmatmul.mubr.bf16.gmra.mrb[0].mxu0 %v1836
        %v1893 = vpop.f32.mrb[0].mxu0
        %v1894 = vadd.f32 0.0, %v1893
        %v1895 = vpop.f32.mrb[0].mxu0
        %v1896 = vpop.f32.mrb[0].mxu0
        %v1897 = vadd.f32 0.0, %v1896
        %v1898 = vpop.f32.mrb[0].mxu0
        %1899 = vmatprep.mubr.bf16.mxu0 0
        %1900 = vmatmul.mubr.bf16.gmra.mrb[0].mxu0 %v1839
        %v1901 = vpop.f32.mrb[0].mxu0
        %v1902 = vadd.f32 0.0, %v1901
        %v1903 = vpop.f32.mrb[0].mxu0
        %v1904 = vpop.f32.mrb[0].mxu0
        %v1905 = vadd.f32 0.0, %v1904
        %v1906 = vpop.f32.mrb[0].mxu0
        %1907 = vmatprep.mubr.bf16.mxu0 0
        %1908 = vmatmul.mubr.bf16.gmra.mrb[0].mxu0 %v1842
        %v1909 = vpop.f32.mrb[0].mxu0
        %v1910 = vadd.f32 0.0, %v1909
        %v1911 = vpop.f32.mrb[0].mxu0
        %v1912 = vpop.f32.mrb[0].mxu0
        %v1913 = vadd.f32 0.0, %v1912
        %v1914 = vpop.f32.mrb[0].mxu0
        %1915 = vmatprep.mubr.bf16.mxu0 0
        %1916 = vmatmul.mubr.bf16.gmra.mrb[0].mxu0 %v1845
        %v1917 = vpop.f32.mrb[0].mxu0
        %v1918 = vadd.f32 0.0, %v1917
        %v1919 = vpop.f32.mrb[0].mxu0
        %v1920 = vpop.f32.mrb[0].mxu0
        %v1921 = vadd.f32 0.0, %v1920
        %v1922 = vpop.f32.mrb[0].mxu0
        %1923 = vdwg.mxu0
        %v1924 = vsel %vm598, %v1894, -inf
        %1925 = vmax.xlane.f32.xlu0 %v1924
        %v1926 = vpop.xlane.xlu0 %1925
        %v1927 = vsel %vm598, %v1897, -inf
        %1928 = vmax.xlane.f32.xlu0 %v1927
        %v1929 = vpop.xlane.xlu0 %1928
        %v1930 = vsel %vm598, %v1902, -inf
        %1931 = vmax.xlane.f32.xlu0 %v1930
        %v1932 = vpop.xlane.xlu0 %1931
        %v1933 = vsel %vm598, %v1905, -inf
        %1934 = vmax.xlane.f32.xlu0 %v1933
        %v1935 = vpop.xlane.xlu0 %1934
        %v1936 = vsel %vm598, %v1910, -inf
        %1937 = vmax.xlane.f32.xlu0 %v1936
        %v1938 = vpop.xlane.xlu0 %1937
        %v1939 = vsel %vm598, %v1913, -inf
        %1940 = vmax.xlane.f32.xlu0 %v1939
        %v1941 = vpop.xlane.xlu0 %1940
        %v1942 = vsel %vm598, %v1918, -inf
        %1943 = vmax.xlane.f32.xlu0 %v1942
        %v1944 = vpop.xlane.xlu0 %1943
        %v1945 = vsel %vm598, %v1921, -inf
        %1946 = vmax.xlane.f32.xlu0 %v1945
        %v1947 = vpop.xlane.xlu0 %1946
        %v1948 = vsub.f32 %v1894, %v1926
        %v1949 = vsub.f32 %v1897, %v1929
        %v1950 = vsub.f32 %v1902, %v1932
        %v1951 = vsub.f32 %v1905, %v1935
        %v1952 = vsub.f32 %v1910, %v1938
        %v1953 = vsub.f32 %v1913, %v1941
        %v1954 = vsub.f32 %v1918, %v1944
        %v1955 = vsub.f32 %v1921, %v1947
        %v1956 = vmul.f32 %v1948, 1.442695
        %v1957 = vpow.pop %v1956
        %v1958 = vmul.f32 %v1949, 1.442695
        %v1959 = vpow.pop %v1958
        %v1960 = vmul.f32 %v1950, 1.442695
        %v1961 = vpow.pop %v1960
        %v1962 = vmul.f32 %v1951, 1.442695
        %v1963 = vpow.pop %v1962
        %v1964 = vmul.f32 %v1952, 1.442695
        %v1965 = vpow.pop %v1964
        %v1966 = vmul.f32 %v1953, 1.442695
        %v1967 = vpow.pop %v1966
        %v1968 = vmul.f32 %v1954, 1.442695
        %v1969 = vpow.pop %v1968
        %v1970 = vmul.f32 %v1955, 1.442695
        %v1971 = vpow.pop %v1970
        %v1972 = vsel %vm598, %v1957, 0.0
        %1973 = vadd.xlane.f32.xlu0 %v1972
        %v1974 = vpop.xlane.xlu0 %1973
        %v1975 = vsel %vm598, %v1959, 0.0
        %1976 = vadd.xlane.f32.xlu0 %v1975
        %v1977 = vpop.xlane.xlu0 %1976
        %v1978 = vsel %vm598, %v1961, 0.0
        %1979 = vadd.xlane.f32.xlu0 %v1978
        %v1980 = vpop.xlane.xlu0 %1979
        %v1981 = vsel %vm598, %v1963, 0.0
        %1982 = vadd.xlane.f32.xlu0 %v1981
        %v1983 = vpop.xlane.xlu0 %1982
        %v1984 = vsel %vm598, %v1965, 0.0
        %1985 = vadd.xlane.f32.xlu0 %v1984
        %v1986 = vpop.xlane.xlu0 %1985
        %v1987 = vsel %vm598, %v1967, 0.0
        %1988 = vadd.xlane.f32.xlu0 %v1987
        %v1989 = vpop.xlane.xlu0 %1988
        %v1990 = vsel %vm598, %v1969, 0.0
        %1991 = vadd.xlane.f32.xlu0 %v1990
        %v1992 = vpop.xlane.xlu0 %1991
        %v1993 = vsel %vm598, %v1971, 0.0
        %1994 = vadd.xlane.f32.xlu0 %v1993
        %v1995 = vpop.xlane.xlu0 %1994
        %v1996 = vrcp.pop %v1974
        %v1997 = vrcp.pop %v1977
        %v1998 = vrcp.pop %v1980
        %v1999 = vrcp.pop %v1983
        %v2000 = vrcp.pop %v1986
        %v2001 = vrcp.pop %v1989
        %v2002 = vrcp.pop %v1992
        %v2003 = vrcp.pop %v1995
        %v2004 = vmul.f32 %v1957, %v1996
        %v2005 = vmul.f32 %v1959, %v1997
        %v2006 = vmul.f32 %v1961, %v1998
        %v2007 = vmul.f32 %v1963, %v1999
        %v2008 = vmul.f32 %v1965, %v2000
        %v2009 = vmul.f32 %v1967, %v2001
        %v2010 = vmul.f32 %v1969, %v2002
        %v2011 = vmul.f32 %v1971, %v2003
        %v2012 = vpack.c.bf16 %v2005, %v2004
        %v2013 = vpack.c.bf16 %v2007, %v2006
        %v2014 = vpack.c.bf16 %v2009, %v2008
        %v2015 = vpack.c.bf16 %v2011, %v2010
        %2016 = vrot.lane.b32.xlu0 %v882, 80
        %v2017 = vpop.permute.xlu0 %2016
        %2018 = vrot.lane.b32.xlu0 %v883, 80
        %v2019 = vpop.permute.xlu0 %2018
        %2020 = vrot.lane.b32.xlu0 %v884, 80
        %v2021 = vpop.permute.xlu0 %2020
        %2022 = vrot.lane.b32.xlu0 %v885, 80
        %v2023 = vpop.permute.xlu0 %2022
        %v2029 = vsel %vm598, %v2012, 0
        %v2032 = vsel %vm598, %v2013, 0
        %v2035 = vsel %vm598, %v2014, 0
        %v2038 = vsel %vm598, %v2015, 0
        %2040 = vmatprep.subr.bf16.mxu0 0
        %2041 = vmatpush1.bf16.msra.mxu0 %v2017
        %2042 = vmatprep.subr.bf16.mxu0 0
        %2043 = vmatpush1.bf16.msra.mxu0 %v2019
        %2044 = vmatprep.subr.bf16.mxu0 0
        %2045 = vmatpush1.bf16.msra.mxu0 %v2021
        %2046 = vmatprep.subr.bf16.mxu0 0
        %2047 = vmatpush1.bf16.msra.mxu0 %v2023
        %2048 = vmatprep.subr.bf16.mxu0 0
        %2049 = vmatpush1.bf16.msra.mxu0 0
        %2050 = vmatprep.subr.bf16.mxu0 0
        %2051 = vmatpush1.bf16.msra.mxu0 0
        %2052 = vmatprep.subr.bf16.mxu0 0
        %2053 = vmatpush1.bf16.msra.mxu0 0
        %2054 = vmatprep.subr.bf16.mxu0 0
        %2055 = vmatpush1.bf16.msra.mxu0 0
        %2056 = vmatprep.subr.bf16.mxu0 0
        %2057 = vmatpush1.bf16.msra.mxu0 0
        %2058 = vmatprep.subr.bf16.mxu0 0
        %2059 = vmatpush1.bf16.msra.mxu0 0
        %2060 = vmatprep.subr.bf16.mxu0 0
        %2061 = vmatpush1.bf16.msra.mxu0 0
        %2062 = vmatprep.subr.bf16.mxu0 0
        %2063 = vmatpush1.bf16.msra.mxu0 0
        %2064 = vmatprep.subr.bf16.mxu0 0
        %2065 = vmatpush1.bf16.msra.mxu0 0
        %2066 = vmatprep.subr.bf16.mxu0 0
        %2067 = vmatpush1.bf16.msra.mxu0 0
        %2068 = vmatprep.subr.bf16.mxu0 0
        %2069 = vmatpush1.bf16.msra.mxu0 0
        %2070 = vmatprep.subr.bf16.mxu0 0
        %2071 = vmatpush1.bf16.msra.mxu0 0
        %2072 = vmatprep.mubr.bf16.mxu0 0
        %2073 = vmatmul.mubr.bf16.gmra.mrb[0].mxu0 %v2029
        %v2074 = vpop.f32.mrb[0].mxu0
        %v2075 = vadd.f32 0.0, %v2074
        %v2076 = vpop.f32.mrb[0].mxu0
        %v2077 = vpop.f32.mrb[0].mxu0
        %v2078 = vadd.f32 0.0, %v2077
        %v2079 = vpop.f32.mrb[0].mxu0
        %2080 = vmatprep.mubr.bf16.mxu0 0
        %2081 = vmatmul.mubr.bf16.gmra.mrb[0].mxu0 %v2032
        %v2082 = vpop.f32.mrb[0].mxu0
        %v2083 = vadd.f32 0.0, %v2082
        %v2084 = vpop.f32.mrb[0].mxu0
        %v2085 = vpop.f32.mrb[0].mxu0
        %v2086 = vadd.f32 0.0, %v2085
        %v2087 = vpop.f32.mrb[0].mxu0
        %2088 = vmatprep.mubr.bf16.mxu0 0
        %2089 = vmatmul.mubr.bf16.gmra.mrb[0].mxu0 %v2035
        %v2090 = vpop.f32.mrb[0].mxu0
        %v2091 = vadd.f32 0.0, %v2090
        %v2092 = vpop.f32.mrb[0].mxu0
        %v2093 = vpop.f32.mrb[0].mxu0
        %v2094 = vadd.f32 0.0, %v2093
        %v2095 = vpop.f32.mrb[0].mxu0
        %2096 = vmatprep.mubr.bf16.mxu0 0
        %2097 = vmatmul.mubr.bf16.gmra.mrb[0].mxu0 %v2038
        %v2098 = vpop.f32.mrb[0].mxu0
        %v2099 = vadd.f32 0.0, %v2098
        %v2100 = vpop.f32.mrb[0].mxu0
        %v2101 = vpop.f32.mrb[0].mxu0
        %v2102 = vadd.f32 0.0, %v2101
        %v2103 = vpop.f32.mrb[0].mxu0
        %2104 = vdwg.mxu0
        %2113 = vrot.lane.b32.xlu0 %v2075, 48
        %v2114 = vpop.permute.xlu0 %2113
        %2115 = vrot.lane.b32.xlu0 %v2078, 48
        %v2116 = vpop.permute.xlu0 %2115
        %2117 = vrot.lane.b32.xlu0 %v2083, 48
        %v2118 = vpop.permute.xlu0 %2117
        %2119 = vrot.lane.b32.xlu0 %v2086, 48
        %v2120 = vpop.permute.xlu0 %2119
        %2121 = vrot.lane.b32.xlu0 %v2091, 48
        %v2122 = vpop.permute.xlu0 %2121
        %2123 = vrot.lane.b32.xlu0 %v2094, 48
        %v2124 = vpop.permute.xlu0 %2123
        %2125 = vrot.lane.b32.xlu0 %v2099, 48
        %v2126 = vpop.permute.xlu0 %2125
        %2127 = vrot.lane.b32.xlu0 %v2102, 48
        %v2128 = vpop.permute.xlu0 %2127
        %vm2137 = vcmask 523648
        %2138 = vst.msk [vmem:[#allocation3] sm:$0xff] %vm2137, %v2114
        %2139 = vst.msk [vmem:[#allocation3 + $0x8] sm:$0xff] %vm2137, %v2116
        %2140 = vst.msk [vmem:[#allocation3 + $0x10] sm:$0xff] %vm2137, %v2118
        %2141 = vst.msk [vmem:[#allocation3 + $0x18] sm:$0xff] %vm2137, %v2120
        %2142 = vst.msk [vmem:[#allocation3 + $0x20] sm:$0xff] %vm2137, %v2122
        %2143 = vst.msk [vmem:[#allocation3 + $0x28] sm:$0xff] %vm2137, %v2124
        %2144 = vst.msk [vmem:[#allocation3 + $0x30] sm:$0xff] %vm2137, %v2126
        %2145 = vst.msk [vmem:[#allocation3 + $0x38] sm:$0xff] %vm2137, %v2128
        %v2146 = vld [vmem:[#allocation4] sm:$0xff]
        %v2147 = vld [vmem:[#allocation4 + $0x8] sm:$0xff]
        %v2148 = vld [vmem:[#allocation4 + $0x10] sm:$0xff]
        %v2149 = vld [vmem:[#allocation4 + $0x18] sm:$0xff]
        %v2150 = vld [vmem:[#allocation4 + $0x20] sm:$0xff]
        %v2151 = vld [vmem:[#allocation4 + $0x28] sm:$0xff]
        %v2152 = vld [vmem:[#allocation4 + $0x30] sm:$0xff]
        %v2153 = vld [vmem:[#allocation4 + $0x38] sm:$0xff]
        %v2154 = vld [vmem:[#allocation3] sm:$0xff]
        %v2155 = vld [vmem:[#allocation3 + $0x8] sm:$0xff]
        %v2156 = vld [vmem:[#allocation3 + $0x10] sm:$0xff]
        %v2157 = vld [vmem:[#allocation3 + $0x18] sm:$0xff]
        %v2158 = vld [vmem:[#allocation3 + $0x20] sm:$0xff]
        %v2159 = vld [vmem:[#allocation3 + $0x28] sm:$0xff]
        %v2160 = vld [vmem:[#allocation3 + $0x30] sm:$0xff]
        %v2161 = vld [vmem:[#allocation3 + $0x38] sm:$0xff]
        %v2162 = vpack.c.bf16 %v2155, %v2154
        %v2163 = vpack.c.bf16 %v2157, %v2156
        %v2164 = vpack.c.bf16 %v2159, %v2158
        %v2165 = vpack.c.bf16 %v2161, %v2160
        %s2166 = smul.addr %s563, 4
        %s2167 = scalar_lea.vmem [#allocation13], %s2166
        %v2168 = vld [vmem:[%s2167] sm:$0xf]
        %v2169 = vld [vmem:[%s2167 + $0x4] sm:$0xf]
        %v2170 = vld [vmem:[%s2167 + $0x8] sm:$0xf]
        %v2171 = vld [vmem:[%s2167 + $0xc] sm:$0xf]
        %v2172 = vld [vmem:[%s2167 + $0x10] sm:$0xf]
        %v2173 = vld [vmem:[%s2167 + $0x14] sm:$0xf]
        %v2174 = vld [vmem:[%s2167 + $0x18] sm:$0xf]
        %v2175 = vld [vmem:[%s2167 + $0x1c] sm:$0xf]
        %v2184 = vunpack.c.l.b16 %v2168
        %v2185 = vunpack.c.l.b16 %v2169
        %v2186 = vunpack.c.l.b16 %v2170
        %v2187 = vunpack.c.l.b16 %v2171
        %v2188 = vunpack.c.l.b16 %v2172
        %v2189 = vunpack.c.l.b16 %v2173
        %v2190 = vunpack.c.l.b16 %v2174
        %v2191 = vunpack.c.l.b16 %v2175
        %v2192 = vpack.c.b16 %v2185, %v2184
        %v2193 = vpack.c.b16 %v2187, %v2186
        %v2194 = vpack.c.b16 %v2189, %v2188
        %v2195 = vpack.c.b16 %v2191, %v2190
        %v2201 = vsel %vm598, %v2162, 0
        %v2204 = vsel %vm598, %v2163, 0
        %v2207 = vsel %vm598, %v2164, 0
        %v2210 = vsel %vm598, %v2165, 0
        %2212 = vmatprep.subr.bf16.mxu0 0
        %2213 = vmatpush1.bf16.msra.mxu0 %v2192
        %2214 = vmatprep.subr.bf16.mxu0 0
        %2215 = vmatpush1.bf16.msra.mxu0 %v2193
        %2216 = vmatprep.subr.bf16.mxu0 0
        %2217 = vmatpush1.bf16.msra.mxu0 %v2194
        %2218 = vmatprep.subr.bf16.mxu0 0
        %2219 = vmatpush1.bf16.msra.mxu0 %v2195
        %2220 = vmatprep.subr.bf16.mxu0 0
        %2221 = vmatpush1.bf16.msra.mxu0 0
        %2222 = vmatprep.subr.bf16.mxu0 0
        %2223 = vmatpush1.bf16.msra.mxu0 0
        %2224 = vmatprep.subr.bf16.mxu0 0
        %2225 = vmatpush1.bf16.msra.mxu0 0
        %2226 = vmatprep.subr.bf16.mxu0 0
        %2227 = vmatpush1.bf16.msra.mxu0 0
        %2228 = vmatprep.subr.bf16.mxu0 0
        %2229 = vmatpush1.bf16.msra.mxu0 0
        %2230 = vmatprep.subr.bf16.mxu0 0
        %2231 = vmatpush1.bf16.msra.mxu0 0
        %2232 = vmatprep.subr.bf16.mxu0 0
        %2233 = vmatpush1.bf16.msra.mxu0 0
        %2234 = vmatprep.subr.bf16.mxu0 0
        %2235 = vmatpush1.bf16.msra.mxu0 0
        %2236 = vmatprep.subr.bf16.mxu0 0
        %2237 = vmatpush1.bf16.msra.mxu0 0
        %2238 = vmatprep.subr.bf16.mxu0 0
        %2239 = vmatpush1.bf16.msra.mxu0 0
        %2240 = vmatprep.subr.bf16.mxu0 0
        %2241 = vmatpush1.bf16.msra.mxu0 0
        %2242 = vmatprep.subr.bf16.mxu0 0
        %2243 = vmatpush1.bf16.msra.mxu0 0
        %2244 = vmatprep.mubr.bf16.mxu0 0
        %2245 = vmatmul.mubr.bf16.gmra.mrb[0].mxu0 %v2201
        %v2246 = vpop.f32.mrb[0].mxu0
        %v2247 = vadd.f32 0.0, %v2246
        %v2248 = vpop.f32.mrb[0].mxu0
        %v2249 = vpop.f32.mrb[0].mxu0
        %v2250 = vadd.f32 0.0, %v2249
        %v2251 = vpop.f32.mrb[0].mxu0
        %2252 = vmatprep.mubr.bf16.mxu0 0
        %2253 = vmatmul.mubr.bf16.gmra.mrb[0].mxu0 %v2204
        %v2254 = vpop.f32.mrb[0].mxu0
        %v2255 = vadd.f32 0.0, %v2254
        %v2256 = vpop.f32.mrb[0].mxu0
        %v2257 = vpop.f32.mrb[0].mxu0
        %v2258 = vadd.f32 0.0, %v2257
        %v2259 = vpop.f32.mrb[0].mxu0
        %2260 = vmatprep.mubr.bf16.mxu0 0
        %2261 = vmatmul.mubr.bf16.gmra.mrb[0].mxu0 %v2207
        %v2262 = vpop.f32.mrb[0].mxu0
        %v2263 = vadd.f32 0.0, %v2262
        %v2264 = vpop.f32.mrb[0].mxu0
        %v2265 = vpop.f32.mrb[0].mxu0
        %v2266 = vadd.f32 0.0, %v2265
        %v2267 = vpop.f32.mrb[0].mxu0
        %2268 = vmatprep.mubr.bf16.mxu0 0
        %2269 = vmatmul.mubr.bf16.gmra.mrb[0].mxu0 %v2210
        %v2270 = vpop.f32.mrb[0].mxu0
        %v2271 = vadd.f32 0.0, %v2270
        %v2272 = vpop.f32.mrb[0].mxu0
        %v2273 = vpop.f32.mrb[0].mxu0
        %v2274 = vadd.f32 0.0, %v2273
        %v2275 = vpop.f32.mrb[0].mxu0
        %2276 = vdwg.mxu0
        %v2277 = vadd.f32 %v2146, %v2247
        %v2278 = vadd.f32 %v2147, %v2250
        %v2279 = vadd.f32 %v2148, %v2255
        %v2280 = vadd.f32 %v2149, %v2258
        %v2281 = vadd.f32 %v2150, %v2263
        %v2282 = vadd.f32 %v2151, %v2266
        %v2283 = vadd.f32 %v2152, %v2271
        %v2284 = vadd.f32 %v2153, %v2274
        %2285 = vst.msk [vmem:[#allocation4] sm:$0xff] %vm598, %v2277
        %2286 = vst.msk [vmem:[#allocation4 + $0x8] sm:$0xff] %vm598, %v2278
        %2287 = vst.msk [vmem:[#allocation4 + $0x10] sm:$0xff] %vm598, %v2279
        %2288 = vst.msk [vmem:[#allocation4 + $0x18] sm:$0xff] %vm598, %v2280
        %2289 = vst.msk [vmem:[#allocation4 + $0x20] sm:$0xff] %vm598, %v2281
        %2290 = vst.msk [vmem:[#allocation4 + $0x28] sm:$0xff] %vm598, %v2282
        %2291 = vst.msk [vmem:[#allocation4 + $0x30] sm:$0xff] %vm598, %v2283
        %2292 = vst.msk [vmem:[#allocation4 + $0x38] sm:$0xff] %vm598, %v2284
        // Predicated region
        $region77: #{tpu_custom_call.1} parent=51 // pred_check
          %p2293 = pneg %p395
        $region78: #{tpu_custom_call.1} parent=51 // pred_check_branch
          %2295 = sbr.rel (%p2293) target = $region80
        $region79: #{tpu_custom_call.1} parent=51 // pred_region
          %v2296 = vld [vmem:[%s345] sm:$0xff]
          %v2297 = vld [vmem:[%s345 + $0x8] sm:$0xff]
          %v2298 = vld [vmem:[%s345 + $0x10] sm:$0xff]
          %v2299 = vld [vmem:[%s345 + $0x18] sm:$0xff]
          %v2300 = vld [vmem:[%s345 + $0x20] sm:$0xff]
          %v2301 = vld [vmem:[%s345 + $0x28] sm:$0xff]
          %v2302 = vld [vmem:[%s345 + $0x30] sm:$0xff]
          %v2303 = vld [vmem:[%s345 + $0x38] sm:$0xff]
          %v2304 = vld [vmem:[%s7] sm:$0x1]
          %v2306 = vlaneseq
          %v2307 = vshrl.u32 %v2306, 7
          %v2308 = vsub.s32 0, %v2307
          %v2309 = vrot.slane %v2304, %v2308
          %v2311 = vadd.f32 %v2296, %v2309
          %v2312 = vadd.f32 %v2297, %v2309
          %v2313 = vadd.f32 %v2298, %v2309
          %v2314 = vadd.f32 %v2299, %v2309
          %v2315 = vadd.f32 %v2300, %v2309
          %v2316 = vadd.f32 %v2301, %v2309
          %v2317 = vadd.f32 %v2302, %v2309
          %v2318 = vadd.f32 %v2303, %v2309
          %v2319 = vld [vmem:[#allocation4] sm:$0xff]
          %v2320 = vld [vmem:[#allocation4 + $0x8] sm:$0xff]
          %v2321 = vld [vmem:[#allocation4 + $0x10] sm:$0xff]
          %v2322 = vld [vmem:[#allocation4 + $0x18] sm:$0xff]
          %v2323 = vld [vmem:[#allocation4 + $0x20] sm:$0xff]
          %v2324 = vld [vmem:[#allocation4 + $0x28] sm:$0xff]
          %v2325 = vld [vmem:[#allocation4 + $0x30] sm:$0xff]
          %v2326 = vld [vmem:[#allocation4 + $0x38] sm:$0xff]
          %v2327 = vadd.f32 %v2311, %v2319
          %v2328 = vadd.f32 %v2312, %v2320
          %v2329 = vadd.f32 %v2313, %v2321
          %v2330 = vadd.f32 %v2314, %v2322
          %v2331 = vadd.f32 %v2315, %v2323
          %v2332 = vadd.f32 %v2316, %v2324
          %v2333 = vadd.f32 %v2317, %v2325
          %v2334 = vadd.f32 %v2318, %v2326
          %2335 = vst.msk [vmem:[%s393] sm:$0xff] %vm598, %v2327
          %2336 = vst.msk [vmem:[%s393 + $0x8] sm:$0xff] %vm598, %v2328
          %2337 = vst.msk [vmem:[%s393 + $0x10] sm:$0xff] %vm598, %v2329
          %2338 = vst.msk [vmem:[%s393 + $0x18] sm:$0xff] %vm598, %v2330
          %2339 = vst.msk [vmem:[%s393 + $0x20] sm:$0xff] %vm598, %v2331
          %2340 = vst.msk [vmem:[%s393 + $0x28] sm:$0xff] %vm598, %v2332
          %2341 = vst.msk [vmem:[%s393 + $0x30] sm:$0xff] %vm598, %v2333
          %2342 = vst.msk [vmem:[%s393 + $0x38] sm:$0xff] %vm598, %v2334
        $region80: #{tpu_custom_call.1} parent=51 // pred_fallthru
          _
        %s2343 = sand.u32 %s220, 1
        %s2344 = scalar_lea.sflag [#allocation7], %s2343
        %s2345 = sand.u32 %s220, 1
        %s2346 = smul.addr %s2345, 64
        %s2347 = scalar_lea.vmem [#allocation14], %s2346
        // Predicated region
        $region81: #{tpu_custom_call.1} parent=51 // pred_check
          %p2348 = pneg %p230
        $region82: #{tpu_custom_call.1} parent=51 // pred_check_branch
          %2350 = sbr.rel (%p2348) target = $region84
        $region83: #{tpu_custom_call.1} parent=51 // pred_region
          %s2352 = ssub.s32 1024, 1024
          %2353 = vsyncadd %s2344, %s2352
          %s2354 = smul.addr %s31, 8
          %s2355 = smul.addr %s2354, 128
          %s2356 = scalar_lea.hbm %s8, %s2355
          %s2357 = sshll.u32 %s2347, 4
          %s2358 = int_to_ptr.vmem [resolvable:$true] %s2357
          %2363 = dma.vmem_to_hbm [thread:$0]  %s2358, 1024, %s2356, %s2344, 128, 128, 8
        $region84: #{tpu_custom_call.1} parent=51 // pred_fallthru
          _
      $region52: #{tpu_custom_call.1} parent=5 // pred_fallthru
        _
      %p2364 = scmp.le.s32.totalorder 2, %s22
      // Predicated region
      $region85: #{tpu_custom_call.1} parent=5 // pred_check
        %p2365 = pneg %p2364
      $region86: #{tpu_custom_call.1} parent=5 // pred_check_branch
        %2367 = sbr.rel (%p2365) target = $region88
      $region87: #{tpu_custom_call.1} parent=5 // pred_region
        %s2368 = ssub.s32 %s22, 2
        // Predicated region
        $region89: #{tpu_custom_call.1} parent=87 // pred_check
          %p2369 = pneg %p236
        $region90: #{tpu_custom_call.1} parent=87 // pred_check_branch
          %2371 = sbr.rel (%p2369) target = $region92
        $region91: #{tpu_custom_call.1} parent=87 // pred_region
          %s2372 = sand.u32 %s221, 1
          %s2373 = scalar_lea.sflag [#allocation7], %s2372
          %s2374 = sand.u32 %s221, 1
          %s2375 = smul.addr %s2374, 64
          %s2376 = scalar_lea.vmem [#allocation14], %s2375
          %2377 = dma.done %s2373, 1024
        $region92: #{tpu_custom_call.1} parent=87 // pred_fallthru
          _
      $region88: #{tpu_custom_call.1} parent=5 // pred_fallthru
        _
    $region6: #{tpu_custom_call.1} parent=1 // loop_footer
      %s26 = sadd.s32 1, %s22
    $region7: #{tpu_custom_call.1} parent=1 // loop_footer_branch
      %21 = sbr.rel target = $region3
    $region8: #{tpu_custom_call.1} parent=1 // loop_exit
      _
    %2378 = vsyncpa [#allocation6], 1
    %s2379 = scalar_lea.sflag [#allocation6], 1
    %2380 = vsyncpa %s2379, 1
    %2381 = vsyncpa [#allocation9], 1
    %2382 = vsyncpa [#allocation12], 1
    %2383 = vsyncpa [#allocation7], 1
    %s2384 = scalar_lea.sflag [#allocation7], 1
    %2385 = vsyncpa %s2384, 1

</llo_original>
